<compile_context>
chip_gen: v6e
topology: v6e:2x2x1
jax: 0.10.0
libtpu: 0.0.40
codegen_flags: <defaults>
</compile_context>

<pallas_src>
import functools

import jax
import jax.numpy as jnp
import numpy as np
from jax.experimental import pallas as pl
from jax.experimental.pallas import tpu as pltpu

_VMEM_LIMIT_BYTES = 48 * 1024 * 1024   # explicit scoped-VMEM limit (safe on v5e/v6e/v7x)
_VMEM_BLOCK_BUDGET = 40 * 1024 * 1024  # target for pipelined blocks + scratch


# ----------------------------------------------------------------------------
# Helpers
# ----------------------------------------------------------------------------
def _round_up(n, m):
    return ((n + m - 1) // m) * m


def _pick_tile(n, candidates):
    """Largest candidate tile that evenly divides n (falls back to n)."""
    for c in candidates:
        if c <= n and n % c == 0:
            return c
    return n


def _choose_batch_tile(b_pad, sublanes, target=256):
    """Largest multiple of `sublanes` that divides b_pad and is <= target."""
    if b_pad <= target:
        return b_pad
    c = target - (target % sublanes)
    while c >= sublanes:
        if b_pad % c == 0:
            return c
        c -= sublanes
    return sublanes  # b_pad is always a multiple of sublanes


def _rnn_time_chunk_cap(tb, d_in, h, act_bytes, budget_bytes):
    """Max time-chunk length so 2x(in+out blocks) + f32 pre-act scratch + weights fit."""
    per_t = tb * (2 * d_in * act_bytes + 2 * h * act_bytes + 4 * h)
    fixed = 2 * (d_in * h + h * h) * act_bytes + tb * h * 4 + 2 * h * 4
    return max(1, (budget_bytes - fixed) // per_t)


def _choose_time_chunk(t, cap):
    """Return (chunk, padded_T) with padded_T % chunk == 0 and chunk <= cap."""
    cap = max(1, min(cap, t))
    if t <= cap:
        return t, t
    # Prefer a divisor of T reasonably close to the cap (no time padding).
    for c in range(cap, 0, -1):
        if t % c == 0 and c * 2 > cap:
            return c, t
    # Otherwise pad T up to a multiple of the cap (padded steps are discarded).
    return cap, _round_up(t, cap)


# ----------------------------------------------------------------------------
# Pallas kernels
# ----------------------------------------------------------------------------
def _rnn_layer_kernel(x_ref, w_ih_ref, w_hh_ref, b_ref, out_ref, h_ref, pre_ref):
    """One RNN layer, one (batch tile, time chunk) grid program.

    x_ref:    (TC, TB, D_in)  time-major input chunk (compute dtype)
    w_ih_ref: (D_in, H)       resident across the grid (constant index_map)
    w_hh_ref: (H, H)
    b_ref:    (1, H)          f32, b_ih + b_hh
    out_ref:  (TC, TB, H)     layer output (compute dtype)
    h_ref:    (TB, H) f32     hidden-state carry across time chunks (scratch)
    pre_ref:  (TC, TB, H) f32 staged pre-activations (scratch)
    """
    TC, TB, D_in = x_ref.shape
    H = w_hh_ref.shape[0]
    mm_dtype = w_hh_ref.dtype

    # New batch tile begins at time chunk 0: h0 = 0 (as in the module).
    @pl.when(pl.program_id(1) == 0)
    def _():
        h_ref[...] = jnp.zeros_like(h_ref)

    # ---- Hoisted input projection: one MXU matmul for the whole time chunk.
    x2 = x_ref[...].reshape(TC * TB, D_in)
    pre = jnp.dot(x2, w_ih_ref[...], preferred_element_type=jnp.float32) + b_ref[...]
    pre_ref[...] = pre.reshape(TC, TB, H)

    # ---- Serial recurrence: only (TB,H)x(H,H) matmul + add + tanh per step.
    # h carry and tanh stay in f32; matmul LHS is cast to the weight dtype (bf16).
    def step(t, carry):
        h = h_ref[...]
        h_new = jnp.tanh(
            pre_ref[t]
            + jnp.dot(h.astype(mm_dtype), w_hh_ref[...],
                      preferred_element_type=jnp.float32)
        )
        h_ref[...] = h_new
        out_ref[t] = h_new.astype(out_ref.dtype)
        return carry

    # Partial unroll gives the LLO scheduler visibility to overlap the store /
    # VPU add / EUP tanh with the next step's MXU pushes.
    jax.lax.fori_loop(0, TC, step, 0, unroll=min(8, TC))


def _head_kernel(x_ref, w_ref, b_ref, o_ref):
    """logits tile = x_tile @ w_tile + b_tile (single K block; H fits VMEM)."""
    o_ref[...] = (
        jnp.dot(x_ref[...], w_ref[...], preferred_element_type=jnp.float32)
        + b_ref[...]
    ).astype(o_ref.dtype)


# ----------------------------------------------------------------------------
# Pallas wrappers
# ----------------------------------------------------------------------------
def rnn_layer(x_tbd, w_ih, w_hh, b, *, batch_tile, time_chunk):
    """x_tbd: (T, B, D_in) time-major; returns (T, B, H) in x_tbd.dtype."""
    T, B, D_in = x_tbd.shape
    H = w_hh.shape[0]
    TB, TC = batch_tile, time_chunk
    assert B % TB == 0 and T % TC == 0

    return pl.pallas_call(
        _rnn_layer_kernel,
        out_shape=jax.ShapeDtypeStruct((T, B, H), x_tbd.dtype),
        grid=(B // TB, T // TC),
        in_specs=[
            pl.BlockSpec((TC, TB, D_in), lambda bi, ti: (ti, bi, 0)),
            pl.BlockSpec((D_in, H), lambda bi, ti: (0, 0)),   # weights resident
            pl.BlockSpec((H, H), lambda bi, ti: (0, 0)),
            pl.BlockSpec((1, H), lambda bi, ti: (0, 0)),
        ],
        out_specs=pl.BlockSpec((TC, TB, H), lambda bi, ti: (ti, bi, 0)),
        scratch_shapes=[
            pltpu.VMEM((TB, H), jnp.float32),        # hidden-state carry
            pltpu.VMEM((TC, TB, H), jnp.float32),    # staged pre-activations
        ],
        compiler_params=pltpu.CompilerParams(
            # batch tiles independent -> shard across TensorCores on v7x;
            # time chunks carry the hidden state -> must stay sequential.
            dimension_semantics=("parallel", "arbitrary"),
            vmem_limit_bytes=_VMEM_LIMIT_BYTES,
        ),
    )(x_tbd, w_ih, w_hh, b)


def linear(x_2d, w, b, *, row_tile=512, col_tile=512):
    """Tiled head: x_2d (N, H) @ w (H, V) + b (1, V) -> (N, V) f32."""
    N, H = x_2d.shape
    V = w.shape[1]
    TN = _pick_tile(N, (row_tile, 256, 128, 64, 32, 16, 8))
    TV = _pick_tile(V, (col_tile, 256, 128))
    assert N % TN == 0 and V % TV == 0, (N, TN, V, TV)

    return pl.pallas_call(
        _head_kernel,
        out_shape=jax.ShapeDtypeStruct((N, V), jnp.float32),
        grid=(N // TN, V // TV),
        in_specs=[
            pl.BlockSpec((TN, H), lambda i, j: (i, 0)),
            pl.BlockSpec((H, TV), lambda i, j: (0, j)),
            pl.BlockSpec((1, TV), lambda i, j: (0, j)),
        ],
        out_specs=pl.BlockSpec((TN, TV), lambda i, j: (i, j)),
        compiler_params=pltpu.CompilerParams(
            dimension_semantics=("parallel", "parallel"),
            vmem_limit_bytes=_VMEM_LIMIT_BYTES,
        ),
    )(x_2d, w, b)


# ----------------------------------------------------------------------------
# Parameter preparation (padding / casting done ONCE, outside the jitted forward)
# ----------------------------------------------------------------------------
def prepare_params(params, compute_dtype=jnp.bfloat16):
    emb = params["embedding"]                   # (V, E) f32
    V, E = emb.shape
    H = params["rnn_layers"][0]["w_hh"].shape[0]
    E_pad, H_pad, V_pad = _round_up(E, 128), _round_up(H, 128), _round_up(V, 128)

    out = {"embedding": jnp.pad(emb, ((0, 0), (0, E_pad - E))).astype(compute_dtype)}
    layers = []
    d_in_pad = E_pad
    for layer in params["rnn_layers"]:
        d_in = layer["w_ih"].shape[0]
        layers.append(dict(
            w_ih=jnp.pad(layer["w_ih"],
                         ((0, d_in_pad - d_in), (0, H_pad - H))).astype(compute_dtype),
            w_hh=jnp.pad(layer["w_hh"],
                         ((0, H_pad - H), (0, H_pad - H))).astype(compute_dtype),
            b=jnp.pad(layer["b"], ((0, 0), (0, H_pad - H))),          # f32
        ))
        d_in_pad = H_pad
    out["rnn_layers"] = layers
    out["ffn_w"] = jnp.pad(params["ffn_w"],
                           ((0, H_pad - H), (0, V_pad - V))).astype(compute_dtype)
    out["ffn_b"] = jnp.pad(params["ffn_b"], ((0, 0), (0, V_pad - V)))  # f32
    return out


# ----------------------------------------------------------------------------
# Forward pass
# ----------------------------------------------------------------------------
def rnnlm_forward(tokens, prepared, *, vocab_size):
    """tokens: (B, T) int32 -> logits (B, T, vocab_size) float32."""
    B, T = tokens.shape
    emb_tbl = prepared["embedding"]               # (V, E_pad) compute dtype
    act_dtype = emb_tbl.dtype
    act_bytes = jnp.dtype(act_dtype).itemsize
    E_pad = emb_tbl.shape[1]
    H_pad = prepared["rnn_layers"][0]["w_hh"].shape[0]
    V_pad = prepared["ffn_w"].shape[1]

    # Sublane count depends on the activation dtype; keep (T,TB,D)->(T*TB,D)
    # reshapes layout no-ops (16 for bf16, 8 for f32).
    sub = 16 if act_dtype == jnp.bfloat16 else 8
    B_pad = _round_up(B, sub)

    # Tile choices: big batch tile to fill MXU rows on the serial recurrence,
    # time chunk derived from the VMEM block budget.
    TB = _choose_batch_tile(B_pad, sub, target=256)
    tc_cap = min(512, _rnn_time_chunk_cap(TB, max(E_pad, H_pad), H_pad,
                                          act_bytes, _VMEM_BLOCK_BUDGET))
    TC, T_pad = _choose_time_chunk(T, tc_cap)

    # Embedding gathered directly into time-major layout in the compute dtype
    # (only the tiny int token matrix is transposed, never an activation).
    x = emb_tbl[tokens.T]                                           # (T, B, E_pad)
    x = jnp.pad(x, ((0, T_pad - T), (0, B_pad - B), (0, 0)))        # (T_pad, B_pad, E_pad)

    for layer in prepared["rnn_layers"]:
        x = rnn_layer(x, layer["w_ih"], layer["w_hh"], layer["b"],
                      batch_tile=TB, time_chunk=TC)                 # (T_pad, B_pad, H_pad)

    # Layout fix on the H-wide tensor (V/H x cheaper than transposing logits).
    x = x[:T]                                                       # drop time padding
    x_bt = jnp.transpose(x, (1, 0, 2))                              # (B_pad, T, H_pad)
    flat = x_bt.reshape(B_pad * T, H_pad)

    logits = linear(flat, prepared["ffn_w"], prepared["ffn_b"])     # (B_pad*T, V_pad) f32
    logits = logits.reshape(B_pad, T, V_pad)[:B, :, :vocab_size]
    return logits                                                   # (B, T, V) batch_first


# ----------------------------------------------------------------------------
# Deterministic parameter init (xavier_normal_, zero biases — matches init_weights)
# ----------------------------------------------------------------------------
def xavier_normal(key, shape):
    fan_in, fan_out = shape[1], shape[0]  # torch convention: (out, in)
    std = float(np.sqrt(2.0 / (fan_in + fan_out)))
    return jax.random.normal(key, shape, dtype=jnp.float32) * std


def make_params(key, vocab_size, embedding_dim, hidden_dim, num_layers):
    keys = jax.random.split(key, 2 + 2 * num_layers)
    embedding = xavier_normal(keys[0], (vocab_size, embedding_dim))  # nn.Embedding (V, E)
    rnn_layers = []
    for l in range(num_layers):
        d_in = embedding_dim if l == 0 else hidden_dim
        w_ih_t = xavier_normal(keys[1 + 2 * l], (hidden_dim, d_in))   # torch (H, d_in)
        w_hh_t = xavier_normal(keys[2 + 2 * l], (hidden_dim, hidden_dim))
        rnn_layers.append(dict(
            w_ih=jnp.transpose(w_ih_t),                  # (d_in, H)
            w_hh=jnp.transpose(w_hh_t),                  # (H, H)
            b=jnp.zeros((1, hidden_dim), jnp.float32),   # b_ih + b_hh (both zero)
        ))
    ffn_w_t = xavier_normal(keys[-1], (vocab_size, hidden_dim))       # torch Linear (V, H)
    return dict(
        embedding=embedding,
        rnn_layers=rnn_layers,
        ffn_w=jnp.transpose(ffn_w_t),                    # (H, V)
        ffn_b=jnp.zeros((1, vocab_size), jnp.float32),
    )


# ----------------------------------------------------------------------------
# Pure-JAX reference (same math, unpadded, f32) for the correctness check
# ----------------------------------------------------------------------------
def rnnlm_reference(tokens, params):
    emb = params["embedding"][tokens]
    x = jnp.transpose(emb, (1, 0, 2))  # (T, B, E)
    for layer in params["rnn_layers"]:
        B = x.shape[1]
        H = layer["w_hh"].shape[0]

        def step(h, x_t, layer=layer):
            h_new = jnp.tanh(x_t @ layer["w_ih"] + h @ layer["w_hh"] + layer["b"])
            return h_new, h_new

        _, ys = jax.lax.scan(step, jnp.zeros((B, H), jnp.float32), x)
        x = ys
    out_bt = jnp.transpose(x, (1, 0, 2))
    return out_bt @ params["ffn_w"] + params["ffn_b"][0]


if __name__ == "__main__":
    vocab_size = 32
    embedding_dim = 16
    hidden_dim = 32
    num_layers = 2
    B, T = 2, 8

    key = jax.random.PRNGKey(0)
    pkey, tkey = jax.random.split(key)
    params = make_params(pkey, vocab_size, embedding_dim, hidden_dim, num_layers)
    tokens = jax.random.randint(tkey, (B, T), 0, vocab_size, dtype=jnp.int32)

    ref = jax.block_until_ready(rnnlm_reference(tokens, params))

    # ---- f32 path: strict parity with the PyTorch forward semantics.
    prepared_f32 = prepare_params(params, jnp.float32)
    fwd_f32 = jax.jit(functools.partial(rnnlm_forward, vocab_size=vocab_size))
    out_f32 = jax.block_until_ready(fwd_f32(tokens, prepared_f32))
    assert out_f32.shape == (B, T, vocab_size)
    np.testing.assert_allclose(np.asarray(out_f32), np.asarray(ref), atol=1e-4, rtol=1e-4)

    # ---- bf16 matmul-input path (production default on v6e/v7x): looser tolerance.
    prepared_bf16 = prepare_params(params, jnp.bfloat16)
    out_bf16 = jax.block_until_ready(fwd_f32(tokens, prepared_bf16))
    assert out_bf16.shape == (B, T, vocab_size)
    np.testing.assert_allclose(np.asarray(out_bf16), np.asarray(ref), atol=5e-2, rtol=5e-2)

    print("KERNEL_OK")
</pallas_src>

<mosaic_0001>
module attributes {stable_mosaic.version = 11 : i64} {
  func.func @_head_kernel(%arg0: i32, %arg1: i32, %arg2: memref<64x128xf32, #tpu.memory_space<vmem>>, %arg3: memref<128x128xf32, #tpu.memory_space<vmem>>, %arg4: memref<1x128xf32, #tpu.memory_space<vmem>>, %arg5: memref<64x128xf32, #tpu.memory_space<vmem>>) attributes {dimension_semantics = [#tpu.dimension_semantics<parallel>, #tpu.dimension_semantics<parallel>], iteration_bounds = array<i64: 1, 1>, scalar_prefetch = 0 : i64, scratch_operands = 0 : i64, tpu.core_type = #tpu.core_type<tc>, window_params = [{transform_indices = @transform_0, window_bounds = array<i64: 64, 128>}, {transform_indices = @transform_1, window_bounds = array<i64: 128, 128>}, {transform_indices = @transform_2, window_bounds = array<i64: 1, 128>}, {transform_indices = @transform_3, window_bounds = array<i64: 64, 128>}]} {
    %c0 = arith.constant 0 : index
    %c0_0 = arith.constant 0 : index
    %0 = vector.load %arg2[%c0, %c0_0] : memref<64x128xf32, #tpu.memory_space<vmem>>, vector<64x128xf32>
    %c0_1 = arith.constant 0 : index
    %c0_2 = arith.constant 0 : index
    %1 = vector.load %arg3[%c0_1, %c0_2] : memref<128x128xf32, #tpu.memory_space<vmem>>, vector<128x128xf32>
    %cst = arith.constant dense<0.000000e+00> : vector<64x128xf32>
    %2 = tpu.matmul %0, %1, %cst {dimension_numbers = #tpu.dot_dimension_numbers<[1], [0], [0], [1], [0, 0, 1, 1], [], []>} : vector<64x128xf32>, vector<128x128xf32>, vector<64x128xf32> -> vector<64x128xf32>
    %c0_3 = arith.constant 0 : index
    %c0_4 = arith.constant 0 : index
    %3 = vector.load %arg4[%c0_3, %c0_4] : memref<1x128xf32, #tpu.memory_space<vmem>>, vector<1x128xf32>
    %4 = vector.broadcast %3 : vector<1x128xf32> to vector<64x128xf32>
    %5 = arith.addf %2, %4 : vector<64x128xf32>
    %c0_5 = arith.constant 0 : index
    %c0_6 = arith.constant 0 : index
    %6 = vector.load %arg5[%c0_5, %c0_6] : memref<64x128xf32, #tpu.memory_space<vmem>>, vector<64x128xf32>
    tpu.vector_store %arg5[%c0_5, %c0_6], %5 {strides = array<i32>} : memref<64x128xf32, #tpu.memory_space<vmem>>, vector<64x128xf32>,
    return
  }
  func.func @transform_0(%arg0: i32, %arg1: i32) -> (i32, i32) {
    %c0_i32 = arith.constant 0 : i32
    %c0_i32_0 = arith.constant 0 : i32
    return %arg0, %c0_i32 : i32, i32
  }
  func.func @transform_1(%arg0: i32, %arg1: i32) -> (i32, i32) {
    %c0_i32 = arith.constant 0 : i32
    %c0_i32_0 = arith.constant 0 : i32
    return %c0_i32, %arg1 : i32, i32
  }
  func.func @transform_2(%arg0: i32, %arg1: i32) -> (i32, i32) {
    %c0_i32 = arith.constant 0 : i32
    %c0_i32_0 = arith.constant 0 : i32
    return %c0_i32, %arg1 : i32, i32
  }
  func.func @transform_3(%arg0: i32, %arg1: i32) -> (i32, i32) {
    %c0_i32 = arith.constant 0 : i32
    return %arg0, %arg1 : i32, i32
  }
}

module attributes {stable_mosaic.version = 11 : i64} {
  func.func @_rnn_layer_kernel(%arg0: i32, %arg1: i32, %arg2: memref<8x8x128xf32, #tpu.memory_space<vmem>>, %arg3: memref<128x128xf32, #tpu.memory_space<vmem>>, %arg4: memref<128x128xf32, #tpu.memory_space<vmem>>, %arg5: memref<1x128xf32, #tpu.memory_space<vmem>>, %arg6: memref<8x8x128xf32, #tpu.memory_space<vmem>>, %arg7: memref<8x128xf32, #tpu.memory_space<vmem>>, %arg8: memref<8x8x128xf32, #tpu.memory_space<vmem>>) attributes {dimension_semantics = [#tpu.dimension_semantics<parallel>, #tpu.dimension_semantics<arbitrary>], iteration_bounds = array<i64: 1, 1>, scalar_prefetch = 0 : i64, scratch_operands = 2 : i64, tpu.core_type = #tpu.core_type<tc>, window_params = [{transform_indices = @transform_0, window_bounds = array<i64: 8, 8, 128>}, {pipeline_mode = #tpu.pipeline_mode<synchronous>, transform_indices = @transform_1, window_bounds = array<i64: 128, 128>}, {pipeline_mode = #tpu.pipeline_mode<synchronous>, transform_indices = @transform_2, window_bounds = array<i64: 128, 128>}, {pipeline_mode = #tpu.pipeline_mode<synchronous>, transform_indices = @transform_3, window_bounds = array<i64: 1, 128>}, {transform_indices = @transform_4, window_bounds = array<i64: 8, 8, 128>}]} {
    %c0_i32 = arith.constant 0 : i32
    %0 = arith.cmpi eq, %arg1, %c0_i32 : i32
    %1 = arith.extui %0 : i1 to i32
    %c0_i32_0 = arith.constant 0 : i32
    %2 = arith.cmpi ne, %1, %c0_i32_0 : i32
    scf.if %2 {
      %cst_99 = arith.constant 0.000000e+00 : f32
      %116 = vector.broadcast %cst_99 : f32 to vector<8x128xf32>
      %c0_100 = arith.constant 0 : index
      %c0_101 = arith.constant 0 : index
      %117 = vector.load %arg7[%c0_100, %c0_101] : memref<8x128xf32, #tpu.memory_space<vmem>>, vector<8x128xf32>
      tpu.vector_store %arg7[%c0_100, %c0_101], %116 {strides = array<i32>} : memref<8x128xf32, #tpu.memory_space<vmem>>, vector<8x128xf32>,
    } else {
    }
    %c0 = arith.constant 0 : index
    %c0_1 = arith.constant 0 : index
    %c0_2 = arith.constant 0 : index
    %3 = vector.load %arg2[%c0, %c0_1, %c0_2] : memref<8x8x128xf32, #tpu.memory_space<vmem>>, vector<8x8x128xf32>
    %4 = vector.shape_cast %3 : vector<8x8x128xf32> to vector<64x128xf32>
    %c0_3 = arith.constant 0 : index
    %c0_4 = arith.constant 0 : index
    %5 = vector.load %arg3[%c0_3, %c0_4] : memref<128x128xf32, #tpu.memory_space<vmem>>, vector<128x128xf32>
    %cst = arith.constant dense<0.000000e+00> : vector<64x128xf32>
    %6 = tpu.matmul %4, %5, %cst {dimension_numbers = #tpu.dot_dimension_numbers<[1], [0], [0], [1], [0, 0, 1, 1], [], []>} : vector<64x128xf32>, vector<128x128xf32>, vector<64x128xf32> -> vector<64x128xf32>
    %c0_5 = arith.constant 0 : index
    %c0_6 = arith.constant 0 : index
    %7 = vector.load %arg5[%c0_5, %c0_6] : memref<1x128xf32, #tpu.memory_space<vmem>>, vector<1x128xf32>
    %8 = vector.broadcast %7 : vector<1x128xf32> to vector<64x128xf32>
    %9 = arith.addf %6, %8 : vector<64x128xf32>
    %10 = vector.shape_cast %9 : vector<64x128xf32> to vector<8x8x128xf32>
    %c0_7 = arith.constant 0 : index
    %c0_8 = arith.constant 0 : index
    %c0_9 = arith.constant 0 : index
    %11 = vector.load %arg8[%c0_7, %c0_8, %c0_9] : memref<8x8x128xf32, #tpu.memory_space<vmem>>, vector<8x8x128xf32>
    tpu.vector_store %arg8[%c0_7, %c0_8, %c0_9], %10 {strides = array<i32>} : memref<8x8x128xf32, #tpu.memory_space<vmem>>, vector<8x8x128xf32>,
    %c0_i32_10 = arith.constant 0 : i32
    %c0_11 = arith.constant 0 : index
    %c0_12 = arith.constant 0 : index
    %12 = vector.load %arg7[%c0_11, %c0_12] : memref<8x128xf32, #tpu.memory_space<vmem>>, vector<8x128xf32>
    %13 = arith.index_cast %c0_i32_10 : i32 to index
    %c0_13 = arith.constant 0 : index
    %c0_14 = arith.constant 0 : index
    %14 = vector.load %arg8[%13, %c0_13, %c0_14] : memref<8x8x128xf32, #tpu.memory_space<vmem>>, vector<1x8x128xf32>
    %15 = vector.shape_cast %14 : vector<1x8x128xf32> to vector<8x128xf32>
    %c0_15 = arith.constant 0 : index
    %c0_16 = arith.constant 0 : index
    %16 = vector.load %arg4[%c0_15, %c0_16] : memref<128x128xf32, #tpu.memory_space<vmem>>, vector<128x128xf32>
    %cst_17 = arith.constant dense<0.000000e+00> : vector<8x128xf32>
    %17 = tpu.matmul %12, %16, %cst_17 {dimension_numbers = #tpu.dot_dimension_numbers<[1], [0], [0], [1], [0, 0, 1, 1], [], []>} : vector<8x128xf32>, vector<128x128xf32>, vector<8x128xf32> -> vector<8x128xf32>
    %18 = arith.addf %15, %17 : vector<8x128xf32>
    %19 = math.tanh %18 : vector<8x128xf32>
    %c0_18 = arith.constant 0 : index
    %c0_19 = arith.constant 0 : index
    %20 = vector.load %arg7[%c0_18, %c0_19] : memref<8x128xf32, #tpu.memory_space<vmem>>, vector<8x128xf32>
    tpu.vector_store %arg7[%c0_18, %c0_19], %19 {strides = array<i32>} : memref<8x128xf32, #tpu.memory_space<vmem>>, vector<8x128xf32>,
    %21 = arith.index_cast %c0_i32_10 : i32 to index
    %c0_20 = arith.constant 0 : index
    %c0_21 = arith.constant 0 : index
    %22 = vector.load %arg6[%21, %c0_20, %c0_21] : memref<8x8x128xf32, #tpu.memory_space<vmem>>, vector<1x8x128xf32>
    %23 = vector.shape_cast %22 : vector<1x8x128xf32> to vector<8x128xf32>
    %24 = vector.shape_cast %19 : vector<8x128xf32> to vector<1x8x128xf32>
    tpu.vector_store %arg6[%21, %c0_20, %c0_21], %24 {strides = array<i32>} : memref<8x8x128xf32, #tpu.memory_space<vmem>>, vector<1x8x128xf32>,
    %c1_i32 = arith.constant 1 : i32
    %c0_22 = arith.constant 0 : index
    %c0_23 = arith.constant 0 : index
    %25 = vector.load %arg7[%c0_22, %c0_23] : memref<8x128xf32, #tpu.memory_space<vmem>>, vector<8x128xf32>
    %26 = arith.index_cast %c1_i32 : i32 to index
    %c0_24 = arith.constant 0 : index
    %c0_25 = arith.constant 0 : index
    %27 = vector.load %arg8[%26, %c0_24, %c0_25] : memref<8x8x128xf32, #tpu.memory_space<vmem>>, vector<1x8x128xf32>
    %28 = vector.shape_cast %27 : vector<1x8x128xf32> to vector<8x128xf32>
    %c0_26 = arith.constant 0 : index
    %c0_27 = arith.constant 0 : index
    %29 = vector.load %arg4[%c0_26, %c0_27] : memref<128x128xf32, #tpu.memory_space<vmem>>, vector<128x128xf32>
    %cst_28 = arith.constant dense<0.000000e+00> : vector<8x128xf32>
    %30 = tpu.matmul %25, %29, %cst_28 {dimension_numbers = #tpu.dot_dimension_numbers<[1], [0], [0], [1], [0, 0, 1, 1], [], []>} : vector<8x128xf32>, vector<128x128xf32>, vector<8x128xf32> -> vector<8x128xf32>
    %31 = arith.addf %28, %30 : vector<8x128xf32>
    %32 = math.tanh %31 : vector<8x128xf32>
    %c0_29 = arith.constant 0 : index
    %c0_30 = arith.constant 0 : index
    %33 = vector.load %arg7[%c0_29, %c0_30] : memref<8x128xf32, #tpu.memory_space<vmem>>, vector<8x128xf32>
    tpu.vector_store %arg7[%c0_29, %c0_30], %32 {strides = array<i32>} : memref<8x128xf32, #tpu.memory_space<vmem>>, vector<8x128xf32>,
    %34 = arith.index_cast %c1_i32 : i32 to index
    %c0_31 = arith.constant 0 : index
    %c0_32 = arith.constant 0 : index
    %35 = vector.load %arg6[%34, %c0_31, %c0_32] : memref<8x8x128xf32, #tpu.memory_space<vmem>>, vector<1x8x128xf32>
    %36 = vector.shape_cast %35 : vector<1x8x128xf32> to vector<8x128xf32>
    %37 = vector.shape_cast %32 : vector<8x128xf32> to vector<1x8x128xf32>
    tpu.vector_store %arg6[%34, %c0_31, %c0_32], %37 {strides = array<i32>} : memref<8x8x128xf32, #tpu.memory_space<vmem>>, vector<1x8x128xf32>,
    %c2_i32 = arith.constant 2 : i32
    %c0_33 = arith.constant 0 : index
    %c0_34 = arith.constant 0 : index
    %38 = vector.load %arg7[%c0_33, %c0_34] : memref<8x128xf32, #tpu.memory_space<vmem>>, vector<8x128xf32>
    %39 = arith.index_cast %c2_i32 : i32 to index
    %c0_35 = arith.constant 0 : index
    %c0_36 = arith.constant 0 : index
    %40 = vector.load %arg8[%39, %c0_35, %c0_36] : memref<8x8x128xf32, #tpu.memory_space<vmem>>, vector<1x8x128xf32>
    %41 = vector.shape_cast %40 : vector<1x8x128xf32> to vector<8x128xf32>
    %c0_37 = arith.constant 0 : index
    %c0_38 = arith.constant 0 : index
    %42 = vector.load %arg4[%c0_37, %c0_38] : memref<128x128xf32, #tpu.memory_space<vmem>>, vector<128x128xf32>
    %cst_39 = arith.constant dense<0.000000e+00> : vector<8x128xf32>
    %43 = tpu.matmul %38, %42, %cst_39 {dimension_numbers = #tpu.dot_dimension_numbers<[1], [0], [0], [1], [0, 0, 1, 1], [], []>} : vector<8x128xf32>, vector<128x128xf32>, vector<8x128xf32> -> vector<8x128xf32>
    %44 = arith.addf %41, %43 : vector<8x128xf32>
    %45 = math.tanh %44 : vector<8x128xf32>
    %c0_40 = arith.constant 0 : index
    %c0_41 = arith.constant 0 : index
    %46 = vector.load %arg7[%c0_40, %c0_41] : memref<8x128xf32, #tpu.memory_space<vmem>>, vector<8x128xf32>
    tpu.vector_store %arg7[%c0_40, %c0_41], %45 {strides = array<i32>} : memref<8x128xf32, #tpu.memory_space<vmem>>, vector<8x128xf32>,
    %47 = arith.index_cast %c2_i32 : i32 to index
    %c0_42 = arith.constant 0 : index
    %c0_43 = arith.constant 0 : index
    %48 = vector.load %arg6[%47, %c0_42, %c0_43] : memref<8x8x128xf32, #tpu.memory_space<vmem>>, vector<1x8x128xf32>
    %49 = vector.shape_cast %48 : vector<1x8x128xf32> to vector<8x128xf32>
    %50 = vector.shape_cast %45 : vector<8x128xf32> to vector<1x8x128xf32>
    tpu.vector_store %arg6[%47, %c0_42, %c0_43], %50 {strides = array<i32>} : memref<8x8x128xf32, #tpu.memory_space<vmem>>, vector<1x8x128xf32>,
    %c3_i32 = arith.constant 3 : i32
    %c0_44 = arith.constant 0 : index
    %c0_45 = arith.constant 0 : index
    %51 = vector.load %arg7[%c0_44, %c0_45] : memref<8x128xf32, #tpu.memory_space<vmem>>, vector<8x128xf32>
    %52 = arith.index_cast %c3_i32 : i32 to index
    %c0_46 = arith.constant 0 : index
    %c0_47 = arith.constant 0 : index
    %53 = vector.load %arg8[%52, %c0_46, %c0_47] : memref<8x8x128xf32, #tpu.memory_space<vmem>>, vector<1x8x128xf32>
    %54 = vector.shape_cast %53 : vector<1x8x128xf32> to vector<8x128xf32>
    %c0_48 = arith.constant 0 : index
    %c0_49 = arith.constant 0 : index
    %55 = vector.load %arg4[%c0_48, %c0_49] : memref<128x128xf32, #tpu.memory_space<vmem>>, vector<128x128xf32>
    %cst_50 = arith.constant dense<0.000000e+00> : vector<8x128xf32>
    %56 = tpu.matmul %51, %55, %cst_50 {dimension_numbers = #tpu.dot_dimension_numbers<[1], [0], [0], [1], [0, 0, 1, 1], [], []>} : vector<8x128xf32>, vector<128x128xf32>, vector<8x128xf32> -> vector<8x128xf32>
    %57 = arith.addf %54, %56 : vector<8x128xf32>
    %58 = math.tanh %57 : vector<8x128xf32>
    %c0_51 = arith.constant 0 : index
    %c0_52 = arith.constant 0 : index
    %59 = vector.load %arg7[%c0_51, %c0_52] : memref<8x128xf32, #tpu.memory_space<vmem>>, vector<8x128xf32>
    tpu.vector_store %arg7[%c0_51, %c0_52], %58 {strides = array<i32>} : memref<8x128xf32, #tpu.memory_space<vmem>>, vector<8x128xf32>,
    %60 = arith.index_cast %c3_i32 : i32 to index
    %c0_53 = arith.constant 0 : index
    %c0_54 = arith.constant 0 : index
    %61 = vector.load %arg6[%60, %c0_53, %c0_54] : memref<8x8x128xf32, #tpu.memory_space<vmem>>, vector<1x8x128xf32>
    %62 = vector.shape_cast %61 : vector<1x8x128xf32> to vector<8x128xf32>
    %63 = vector.shape_cast %58 : vector<8x128xf32> to vector<1x8x128xf32>
    tpu.vector_store %arg6[%60, %c0_53, %c0_54], %63 {strides = array<i32>} : memref<8x8x128xf32, #tpu.memory_space<vmem>>, vector<1x8x128xf32>,
    %c4_i32 = arith.constant 4 : i32
    %c0_55 = arith.constant 0 : index
    %c0_56 = arith.constant 0 : index
    %64 = vector.load %arg7[%c0_55, %c0_56] : memref<8x128xf32, #tpu.memory_space<vmem>>, vector<8x128xf32>
    %65 = arith.index_cast %c4_i32 : i32 to index
    %c0_57 = arith.constant 0 : index
    %c0_58 = arith.constant 0 : index
    %66 = vector.load %arg8[%65, %c0_57, %c0_58] : memref<8x8x128xf32, #tpu.memory_space<vmem>>, vector<1x8x128xf32>
    %67 = vector.shape_cast %66 : vector<1x8x128xf32> to vector<8x128xf32>
    %c0_59 = arith.constant 0 : index
    %c0_60 = arith.constant 0 : index
    %68 = vector.load %arg4[%c0_59, %c0_60] : memref<128x128xf32, #tpu.memory_space<vmem>>, vector<128x128xf32>
    %cst_61 = arith.constant dense<0.000000e+00> : vector<8x128xf32>
    %69 = tpu.matmul %64, %68, %cst_61 {dimension_numbers = #tpu.dot_dimension_numbers<[1], [0], [0], [1], [0, 0, 1, 1], [], []>} : vector<8x128xf32>, vector<128x128xf32>, vector<8x128xf32> -> vector<8x128xf32>
    %70 = arith.addf %67, %69 : vector<8x128xf32>
    %71 = math.tanh %70 : vector<8x128xf32>
    %c0_62 = arith.constant 0 : index
    %c0_63 = arith.constant 0 : index
    %72 = vector.load %arg7[%c0_62, %c0_63] : memref<8x128xf32, #tpu.memory_space<vmem>>, vector<8x128xf32>
    tpu.vector_store %arg7[%c0_62, %c0_63], %71 {strides = array<i32>} : memref<8x128xf32, #tpu.memory_space<vmem>>, vector<8x128xf32>,
    %73 = arith.index_cast %c4_i32 : i32 to index
    %c0_64 = arith.constant 0 : index
    %c0_65 = arith.constant 0 : index
    %74 = vector.load %arg6[%73, %c0_64, %c0_65] : memref<8x8x128xf32, #tpu.memory_space<vmem>>, vector<1x8x128xf32>
    %75 = vector.shape_cast %74 : vector<1x8x128xf32> to vector<8x128xf32>
    %76 = vector.shape_cast %71 : vector<8x128xf32> to vector<1x8x128xf32>
    tpu.vector_store %arg6[%73, %c0_64, %c0_65], %76 {strides = array<i32>} : memref<8x8x128xf32, #tpu.memory_space<vmem>>, vector<1x8x128xf32>,
    %c5_i32 = arith.constant 5 : i32
    %c0_66 = arith.constant 0 : index
    %c0_67 = arith.constant 0 : index
    %77 = vector.load %arg7[%c0_66, %c0_67] : memref<8x128xf32, #tpu.memory_space<vmem>>, vector<8x128xf32>
    %78 = arith.index_cast %c5_i32 : i32 to index
    %c0_68 = arith.constant 0 : index
    %c0_69 = arith.constant 0 : index
    %79 = vector.load %arg8[%78, %c0_68, %c0_69] : memref<8x8x128xf32, #tpu.memory_space<vmem>>, vector<1x8x128xf32>
    %80 = vector.shape_cast %79 : vector<1x8x128xf32> to vector<8x128xf32>
    %c0_70 = arith.constant 0 : index
    %c0_71 = arith.constant 0 : index
    %81 = vector.load %arg4[%c0_70, %c0_71] : memref<128x128xf32, #tpu.memory_space<vmem>>, vector<128x128xf32>
    %cst_72 = arith.constant dense<0.000000e+00> : vector<8x128xf32>
    %82 = tpu.matmul %77, %81, %cst_72 {dimension_numbers = #tpu.dot_dimension_numbers<[1], [0], [0], [1], [0, 0, 1, 1], [], []>} : vector<8x128xf32>, vector<128x128xf32>, vector<8x128xf32> -> vector<8x128xf32>
    %83 = arith.addf %80, %82 : vector<8x128xf32>
    %84 = math.tanh %83 : vector<8x128xf32>
    %c0_73 = arith.constant 0 : index
    %c0_74 = arith.constant 0 : index
    %85 = vector.load %arg7[%c0_73, %c0_74] : memref<8x128xf32, #tpu.memory_space<vmem>>, vector<8x128xf32>
    tpu.vector_store %arg7[%c0_73, %c0_74], %84 {strides = array<i32>} : memref<8x128xf32, #tpu.memory_space<vmem>>, vector<8x128xf32>,
    %86 = arith.index_cast %c5_i32 : i32 to index
    %c0_75 = arith.constant 0 : index
    %c0_76 = arith.constant 0 : index
    %87 = vector.load %arg6[%86, %c0_75, %c0_76] : memref<8x8x128xf32, #tpu.memory_space<vmem>>, vector<1x8x128xf32>
    %88 = vector.shape_cast %87 : vector<1x8x128xf32> to vector<8x128xf32>
    %89 = vector.shape_cast %84 : vector<8x128xf32> to vector<1x8x128xf32>
    tpu.vector_store %arg6[%86, %c0_75, %c0_76], %89 {strides = array<i32>} : memref<8x8x128xf32, #tpu.memory_space<vmem>>, vector<1x8x128xf32>,
    %c6_i32 = arith.constant 6 : i32
    %c0_77 = arith.constant 0 : index
    %c0_78 = arith.constant 0 : index
    %90 = vector.load %arg7[%c0_77, %c0_78] : memref<8x128xf32, #tpu.memory_space<vmem>>, vector<8x128xf32>
    %91 = arith.index_cast %c6_i32 : i32 to index
    %c0_79 = arith.constant 0 : index
    %c0_80 = arith.constant 0 : index
    %92 = vector.load %arg8[%91, %c0_79, %c0_80] : memref<8x8x128xf32, #tpu.memory_space<vmem>>, vector<1x8x128xf32>
    %93 = vector.shape_cast %92 : vector<1x8x128xf32> to vector<8x128xf32>
    %c0_81 = arith.constant 0 : index
    %c0_82 = arith.constant 0 : index
    %94 = vector.load %arg4[%c0_81, %c0_82] : memref<128x128xf32, #tpu.memory_space<vmem>>, vector<128x128xf32>
    %cst_83 = arith.constant dense<0.000000e+00> : vector<8x128xf32>
    %95 = tpu.matmul %90, %94, %cst_83 {dimension_numbers = #tpu.dot_dimension_numbers<[1], [0], [0], [1], [0, 0, 1, 1], [], []>} : vector<8x128xf32>, vector<128x128xf32>, vector<8x128xf32> -> vector<8x128xf32>
    %96 = arith.addf %93, %95 : vector<8x128xf32>
    %97 = math.tanh %96 : vector<8x128xf32>
    %c0_84 = arith.constant 0 : index
    %c0_85 = arith.constant 0 : index
    %98 = vector.load %arg7[%c0_84, %c0_85] : memref<8x128xf32, #tpu.memory_space<vmem>>, vector<8x128xf32>
    tpu.vector_store %arg7[%c0_84, %c0_85], %97 {strides = array<i32>} : memref<8x128xf32, #tpu.memory_space<vmem>>, vector<8x128xf32>,
    %99 = arith.index_cast %c6_i32 : i32 to index
    %c0_86 = arith.constant 0 : index
    %c0_87 = arith.constant 0 : index
    %100 = vector.load %arg6[%99, %c0_86, %c0_87] : memref<8x8x128xf32, #tpu.memory_space<vmem>>, vector<1x8x128xf32>
    %101 = vector.shape_cast %100 : vector<1x8x128xf32> to vector<8x128xf32>
    %102 = vector.shape_cast %97 : vector<8x128xf32> to vector<1x8x128xf32>
    tpu.vector_store %arg6[%99, %c0_86, %c0_87], %102 {strides = array<i32>} : memref<8x8x128xf32, #tpu.memory_space<vmem>>, vector<1x8x128xf32>,
    %c7_i32 = arith.constant 7 : i32
    %c0_88 = arith.constant 0 : index
    %c0_89 = arith.constant 0 : index
    %103 = vector.load %arg7[%c0_88, %c0_89] : memref<8x128xf32, #tpu.memory_space<vmem>>, vector<8x128xf32>
    %104 = arith.index_cast %c7_i32 : i32 to index
    %c0_90 = arith.constant 0 : index
    %c0_91 = arith.constant 0 : index
    %105 = vector.load %arg8[%104, %c0_90, %c0_91] : memref<8x8x128xf32, #tpu.memory_space<vmem>>, vector<1x8x128xf32>
    %106 = vector.shape_cast %105 : vector<1x8x128xf32> to vector<8x128xf32>
    %c0_92 = arith.constant 0 : index
    %c0_93 = arith.constant 0 : index
    %107 = vector.load %arg4[%c0_92, %c0_93] : memref<128x128xf32, #tpu.memory_space<vmem>>, vector<128x128xf32>
    %cst_94 = arith.constant dense<0.000000e+00> : vector<8x128xf32>
    %108 = tpu.matmul %103, %107, %cst_94 {dimension_numbers = #tpu.dot_dimension_numbers<[1], [0], [0], [1], [0, 0, 1, 1], [], []>} : vector<8x128xf32>, vector<128x128xf32>, vector<8x128xf32> -> vector<8x128xf32>
    %109 = arith.addf %106, %108 : vector<8x128xf32>
    %110 = math.tanh %109 : vector<8x128xf32>
    %c0_95 = arith.constant 0 : index
    %c0_96 = arith.constant 0 : index
    %111 = vector.load %arg7[%c0_95, %c0_96] : memref<8x128xf32, #tpu.memory_space<vmem>>, vector<8x128xf32>
    tpu.vector_store %arg7[%c0_95, %c0_96], %110 {strides = array<i32>} : memref<8x128xf32, #tpu.memory_space<vmem>>, vector<8x128xf32>,
    %112 = arith.index_cast %c7_i32 : i32 to index
    %c0_97 = arith.constant 0 : index
    %c0_98 = arith.constant 0 : index
    %113 = vector.load %arg6[%112, %c0_97, %c0_98] : memref<8x8x128xf32, #tpu.memory_space<vmem>>, vector<1x8x128xf32>
    %114 = vector.shape_cast %113 : vector<1x8x128xf32> to vector<8x128xf32>
    %115 = vector.shape_cast %110 : vector<8x128xf32> to vector<1x8x128xf32>
    tpu.vector_store %arg6[%112, %c0_97, %c0_98], %115 {strides = array<i32>} : memref<8x8x128xf32, #tpu.memory_space<vmem>>, vector<1x8x128xf32>,
    %c8_i32 = arith.constant 8 : i32
    return
  }
  func.func @transform_0(%arg0: i32, %arg1: i32) -> (i32, i32, i32) {
    %c0_i32 = arith.constant 0 : i32
    %c0_i32_0 = arith.constant 0 : i32
    return %arg1, %arg0, %c0_i32 : i32, i32, i32
  }
  func.func @transform_1(%arg0: i32, %arg1: i32) -> (i32, i32) {
    %c0_i32 = arith.constant 0 : i32
    %c0_i32_0 = arith.constant 0 : i32
    %c0_i32_1 = arith.constant 0 : i32
    return %c0_i32, %c0_i32_0 : i32, i32
  }
  func.func @transform_2(%arg0: i32, %arg1: i32) -> (i32, i32) {
    %c0_i32 = arith.constant 0 : i32
    %c0_i32_0 = arith.constant 0 : i32
    %c0_i32_1 = arith.constant 0 : i32
    return %c0_i32, %c0_i32_0 : i32, i32
  }
  func.func @transform_3(%arg0: i32, %arg1: i32) -> (i32, i32) {
    %c0_i32 = arith.constant 0 : i32
    %c0_i32_0 = arith.constant 0 : i32
    %c0_i32_1 = arith.constant 0 : i32
    return %c0_i32, %c0_i32_0 : i32, i32
  }
  func.func @transform_4(%arg0: i32, %arg1: i32) -> (i32, i32, i32) {
    %c0_i32 = arith.constant 0 : i32
    %c0_i32_0 = arith.constant 0 : i32
    return %arg1, %arg0, %c0_i32 : i32, i32, i32
  }
}

</mosaic_0001>

<llo_original>
// kernel: rnnlm_forward.5
$region0: #{rnnlm_forward.5}
  #allocation0 [shape = 'u32[]', space=smem, size = 0x4, offset = 0x4, fixed_abs, tag = 'smem constant byte address 0x4 - core index']
  #allocation1 [shape = 'u32[144,128]{1,0:T(1,128)}', space=vmem, size = 0x12000, scoped, tag = 'internal scratch']
  %s0 = inlined_call_operand.vmem [shape: f32[64,128], index: 0, kind: input, shape index: {}]
  %s1 = inlined_call_operand.vmem [shape: f32[128,128], index: 1, kind: input, shape index: {}]
  %s2 = inlined_call_operand.vmem [shape: f32[1,128], index: 2, kind: input, shape index: {}]
  %s3 = inlined_call_operand.vmem [shape: f32[64,128], index: 3, kind: output, shape index: {}]
  %s4 = sld [smem:[#allocation0]]
  $region22: #{rnnlm_forward.5} parent=0
    _
  %s6 = ssub.s32 1, %s4
  %s7 = scalar_select 0, %s6, %s4
  // Predicated region
  $region2: #{rnnlm_forward.5} parent=0 // pred_check
    _
  $region3: #{rnnlm_forward.5} parent=0 // pred_check_branch
    %9 = sbr.rel (0) target = $region5
  $region4: #{rnnlm_forward.5} parent=0 // pred_region
    _
  $region5: #{rnnlm_forward.5} parent=0 // pred_fallthru
    _
  // Predicated region
  $region6: #{rnnlm_forward.5} parent=0 // pred_check
    _
  $region7: #{rnnlm_forward.5} parent=0 // pred_check_branch
    %11 = sbr.rel (0) target = $region9
  $region8: #{rnnlm_forward.5} parent=0 // pred_region
    _
  $region9: #{rnnlm_forward.5} parent=0 // pred_fallthru
    _
  // Predicated region
  $region10: #{rnnlm_forward.5} parent=0 // pred_check
    _
  $region11: #{rnnlm_forward.5} parent=0 // pred_check_branch
    %13 = sbr.rel (0) target = $region13
  $region12: #{rnnlm_forward.5} parent=0 // pred_region
    _
  $region13: #{rnnlm_forward.5} parent=0 // pred_fallthru
    _
  %v14 = vld [vmem:[%s0] sm:$0xff]
  %v15 = vld [vmem:[%s0 + $0x8] sm:$0xff]
  %v16 = vld [vmem:[%s0 + $0x10] sm:$0xff]
  %v17 = vld [vmem:[%s0 + $0x18] sm:$0xff]
  %v18 = vld [vmem:[%s0 + $0x20] sm:$0xff]
  %v19 = vld [vmem:[%s0 + $0x28] sm:$0xff]
  %v20 = vld [vmem:[%s0 + $0x30] sm:$0xff]
  %v21 = vld [vmem:[%s0 + $0x38] sm:$0xff]
  %v22 = vld [vmem:[%s1] sm:$0xff]
  %v23 = vld [vmem:[%s1 + $0x8] sm:$0xff]
  %v24 = vld [vmem:[%s1 + $0x10] sm:$0xff]
  %v25 = vld [vmem:[%s1 + $0x18] sm:$0xff]
  %v26 = vld [vmem:[%s1 + $0x20] sm:$0xff]
  %v27 = vld [vmem:[%s1 + $0x28] sm:$0xff]
  %v28 = vld [vmem:[%s1 + $0x30] sm:$0xff]
  %v29 = vld [vmem:[%s1 + $0x38] sm:$0xff]
  %v30 = vld [vmem:[%s1 + $0x40] sm:$0xff]
  %v31 = vld [vmem:[%s1 + $0x48] sm:$0xff]
  %v32 = vld [vmem:[%s1 + $0x50] sm:$0xff]
  %v33 = vld [vmem:[%s1 + $0x58] sm:$0xff]
  %v34 = vld [vmem:[%s1 + $0x60] sm:$0xff]
  %v35 = vld [vmem:[%s1 + $0x68] sm:$0xff]
  %v36 = vld [vmem:[%s1 + $0x70] sm:$0xff]
  %v37 = vld [vmem:[%s1 + $0x78] sm:$0xff]
  %v38 = vld [vmem:[%s2] sm:$0x1]
  %v40 = vlaneseq
  %v41 = vshrl.u32 %v40, 7
  %v42 = vsub.s32 0, %v41
  %v43 = vrot.slane %v38, %v42
  %45 = vmatprep.subr.mxu0 0.0
  %46 = vmatpush1.msra.mxu0 %v37
  %47 = vmatprep.subr.mxu0 0.0
  %48 = vmatpush1.msra.mxu0 %v36
  %49 = vmatprep.subr.mxu0 0.0
  %50 = vmatpush1.msra.mxu0 %v35
  %51 = vmatprep.subr.mxu0 0.0
  %52 = vmatpush1.msra.mxu0 %v34
  %53 = vmatprep.subr.mxu0 0.0
  %54 = vmatpush1.msra.mxu0 %v33
  %55 = vmatprep.subr.mxu0 0.0
  %56 = vmatpush1.msra.mxu0 %v32
  %57 = vmatprep.subr.mxu0 0.0
  %58 = vmatpush1.msra.mxu0 %v31
  %59 = vmatprep.subr.mxu0 0.0
  %60 = vmatpush1.msra.mxu0 %v30
  %61 = vmatprep.subr.mxu0 0.0
  %62 = vmatpush1.msra.mxu0 %v29
  %63 = vmatprep.subr.mxu0 0.0
  %64 = vmatpush1.msra.mxu0 %v28
  %65 = vmatprep.subr.mxu0 0.0
  %66 = vmatpush1.msra.mxu0 %v27
  %67 = vmatprep.subr.mxu0 0.0
  %68 = vmatpush1.msra.mxu0 %v26
  %69 = vmatprep.subr.mxu0 0.0
  %70 = vmatpush1.msra.mxu0 %v25
  %71 = vmatprep.subr.mxu0 0.0
  %72 = vmatpush1.msra.mxu0 %v24
  %73 = vmatprep.subr.mxu0 0.0
  %74 = vmatpush1.msra.mxu0 %v23
  %75 = vmatprep.subr.mxu0 0.0
  %76 = vmatpush1.msra.mxu0 %v22
  %77 = vmatprep.subr.mxu0 0.0
  %78 = vmatpush2.msra.mxu0 0.0
  %79 = vmatprep.subr.mxu0 0.0
  %80 = vmatpush2.msra.mxu0 0.0
  %81 = vmatprep.subr.mxu0 0.0
  %82 = vmatpush2.msra.mxu0 0.0
  %83 = vmatprep.subr.mxu0 0.0
  %84 = vmatpush2.msra.mxu0 0.0
  %85 = vmatprep.subr.mxu0 0.0
  %86 = vmatpush2.msra.mxu0 0.0
  %87 = vmatprep.subr.mxu0 0.0
  %88 = vmatpush2.msra.mxu0 0.0
  %89 = vmatprep.subr.mxu0 0.0
  %90 = vmatpush2.msra.mxu0 0.0
  %91 = vmatprep.subr.mxu0 0.0
  %92 = vmatpush2.msra.mxu0 0.0
  %93 = vmatprep.subr.mxu0 0.0
  %94 = vmatpush2.msra.mxu0 0.0
  %95 = vmatprep.subr.mxu0 0.0
  %96 = vmatpush2.msra.mxu0 0.0
  %97 = vmatprep.subr.mxu0 0.0
  %98 = vmatpush2.msra.mxu0 0.0
  %99 = vmatprep.subr.mxu0 0.0
  %100 = vmatpush2.msra.mxu0 0.0
  %101 = vmatprep.subr.mxu0 0.0
  %102 = vmatpush2.msra.mxu0 0.0
  %103 = vmatprep.subr.mxu0 0.0
  %104 = vmatpush2.msra.mxu0 0.0
  %105 = vmatprep.subr.mxu0 0.0
  %106 = vmatpush2.msra.mxu0 0.0
  %107 = vmatprep.subr.mxu0 0.0
  %108 = vmatpush2.msra.mxu0 0.0
  %109 = vmatprep.mubr.f32.mxu0 0.0
  %110 = vmatmul.mubr.f32.gmra.mxu0 %v14
  %v111 = vpop.f32.mrf.mxu0
  %v112 = vadd.f32 %v43, %v111
  %v113 = vpop.f32.mrf.mxu0
  %114 = vmatprep.mubr.f32.mxu0 0.0
  %115 = vmatmul.mubr.f32.gmra.mxu0 %v15
  %v116 = vpop.f32.mrf.mxu0
  %v117 = vadd.f32 %v43, %v116
  %v118 = vpop.f32.mrf.mxu0
  %119 = vmatprep.mubr.f32.mxu0 0.0
  %120 = vmatmul.mubr.f32.gmra.mxu0 %v16
  %v121 = vpop.f32.mrf.mxu0
  %v122 = vadd.f32 %v43, %v121
  %v123 = vpop.f32.mrf.mxu0
  %124 = vmatprep.mubr.f32.mxu0 0.0
  %125 = vmatmul.mubr.f32.gmra.mxu0 %v17
  %v126 = vpop.f32.mrf.mxu0
  %v127 = vadd.f32 %v43, %v126
  %v128 = vpop.f32.mrf.mxu0
  %129 = vmatprep.mubr.f32.mxu0 0.0
  %130 = vmatmul.mubr.f32.gmra.mxu0 %v18
  %v131 = vpop.f32.mrf.mxu0
  %v132 = vadd.f32 %v43, %v131
  %v133 = vpop.f32.mrf.mxu0
  %134 = vmatprep.mubr.f32.mxu0 0.0
  %135 = vmatmul.mubr.f32.gmra.mxu0 %v19
  %v136 = vpop.f32.mrf.mxu0
  %v137 = vadd.f32 %v43, %v136
  %v138 = vpop.f32.mrf.mxu0
  %139 = vmatprep.mubr.f32.mxu0 0.0
  %140 = vmatmul.mubr.f32.gmra.mxu0 %v20
  %v141 = vpop.f32.mrf.mxu0
  %v142 = vadd.f32 %v43, %v141
  %v143 = vpop.f32.mrf.mxu0
  %144 = vmatprep.mubr.f32.mxu0 0.0
  %145 = vmatmul.mubr.f32.gmra.mxu0 %v21
  %v146 = vpop.f32.mrf.mxu0
  %v147 = vadd.f32 %v43, %v146
  %v148 = vpop.f32.mrf.mxu0
  %149 = vdwg.mxu0
  %150 = vst [vmem:[%s3] sm:$0xff] %v112
  %151 = vst [vmem:[%s3 + $0x8] sm:$0xff] %v117
  %152 = vst [vmem:[%s3 + $0x10] sm:$0xff] %v122
  %153 = vst [vmem:[%s3 + $0x18] sm:$0xff] %v127
  %154 = vst [vmem:[%s3 + $0x20] sm:$0xff] %v132
  %155 = vst [vmem:[%s3 + $0x28] sm:$0xff] %v137
  %156 = vst [vmem:[%s3 + $0x30] sm:$0xff] %v142
  %157 = vst [vmem:[%s3 + $0x38] sm:$0xff] %v147
  // Predicated region
  $region14: #{rnnlm_forward.5} parent=0 // pred_check
    _
  $region15: #{rnnlm_forward.5} parent=0 // pred_check_branch
    %159 = sbr.rel (0) target = $region17
  $region16: #{rnnlm_forward.5} parent=0 // pred_region
    _
  $region17: #{rnnlm_forward.5} parent=0 // pred_fallthru
    _
  // Predicated region
  $region18: #{rnnlm_forward.5} parent=0 // pred_check
    _
  $region19: #{rnnlm_forward.5} parent=0 // pred_check_branch
    %161 = sbr.rel (0) target = $region21
  $region20: #{rnnlm_forward.5} parent=0 // pred_region
    _
  $region21: #{rnnlm_forward.5} parent=0 // pred_fallthru
    _

// kernel: rnnlm_forward.3
$region0: #{rnnlm_forward.3}
  #allocation0 [shape = 'u32[]', space=smem, size = 0x4, offset = 0x4, fixed_abs, tag = 'smem constant byte address 0x4 - core index']
  #allocation1 [shape = 'u32[144,128]{1,0:T(1,128)}', space=vmem, size = 0x12000, scoped, tag = 'internal scratch']
  #allocation2 [shape = 'f32[8,128]{1,0:T(8,128)}', space=vmem, size = 0x1000, scoped, tag = 'scratch operand']
  #allocation3 [shape = 'f32[8,8,128]{2,1,0:T(8,128)}', space=vmem, size = 0x8000, scoped, tag = 'scratch operand']
  %s0 = inlined_call_operand.vmem [shape: f32[8,8,128], index: 0, kind: input, shape index: {}]
  %s1 = inlined_call_operand.vmem [shape: f32[128,128], index: 1, kind: input, shape index: {}]
  %s2 = inlined_call_operand.vmem [shape: f32[128,128], index: 2, kind: input, shape index: {}]
  %s3 = inlined_call_operand.vmem [shape: f32[1,128], index: 3, kind: input, shape index: {}]
  %s4 = inlined_call_operand.vmem [shape: f32[8,8,128], index: 4, kind: output, shape index: {}]
  %s5 = sld [smem:[#allocation0]]
  $region30: #{rnnlm_forward.3} parent=0
    _
  %s7 = ssub.s32 1, %s5
  %s8 = scalar_select 0, %s7, %s5
  // Predicated region
  $region2: #{rnnlm_forward.3} parent=0 // pred_check
    _
  $region3: #{rnnlm_forward.3} parent=0 // pred_check_branch
    %10 = sbr.rel (0) target = $region5
  $region4: #{rnnlm_forward.3} parent=0 // pred_region
    _
  $region5: #{rnnlm_forward.3} parent=0 // pred_fallthru
    _
  // Predicated region
  $region6: #{rnnlm_forward.3} parent=0 // pred_check
    _
  $region7: #{rnnlm_forward.3} parent=0 // pred_check_branch
    %12 = sbr.rel (0) target = $region9
  $region8: #{rnnlm_forward.3} parent=0 // pred_region
    _
  $region9: #{rnnlm_forward.3} parent=0 // pred_fallthru
    _
  // Predicated region
  $region10: #{rnnlm_forward.3} parent=0 // pred_check
    _
  $region11: #{rnnlm_forward.3} parent=0 // pred_check_branch
    %14 = sbr.rel (0) target = $region13
  $region12: #{rnnlm_forward.3} parent=0 // pred_region
    _
  $region13: #{rnnlm_forward.3} parent=0 // pred_fallthru
    _
  // Predicated region
  $region14: #{rnnlm_forward.3} parent=0 // pred_check
    _
  $region15: #{rnnlm_forward.3} parent=0 // pred_check_branch
    %16 = sbr.rel (0) target = $region17
  $region16: #{rnnlm_forward.3} parent=0 // pred_region
    _
  $region17: #{rnnlm_forward.3} parent=0 // pred_fallthru
    _
  %p17 = scmp.eq.s32.totalorder 0, 0
  // Predicated region
  $region18: #{rnnlm_forward.3} parent=0 // pred_check
    %p18 = pneg %p17
  $region19: #{rnnlm_forward.3} parent=0 // pred_check_branch
    %20 = sbr.rel (%p18) target = $region21
  $region20: #{rnnlm_forward.3} parent=0 // pred_region
    %21 = vst [vmem:[#allocation2] sm:$0xff] 0.0
  $region21: #{rnnlm_forward.3} parent=0 // pred_fallthru
    _
  %v22 = vld [vmem:[%s0] sm:$0xff]
  %v23 = vld [vmem:[%s0 + $0x8] sm:$0xff]
  %v24 = vld [vmem:[%s0 + $0x10] sm:$0xff]
  %v25 = vld [vmem:[%s0 + $0x18] sm:$0xff]
  %v26 = vld [vmem:[%s0 + $0x20] sm:$0xff]
  %v27 = vld [vmem:[%s0 + $0x28] sm:$0xff]
  %v28 = vld [vmem:[%s0 + $0x30] sm:$0xff]
  %v29 = vld [vmem:[%s0 + $0x38] sm:$0xff]
  %v30 = vld [vmem:[%s1] sm:$0xff]
  %v31 = vld [vmem:[%s1 + $0x8] sm:$0xff]
  %v32 = vld [vmem:[%s1 + $0x10] sm:$0xff]
  %v33 = vld [vmem:[%s1 + $0x18] sm:$0xff]
  %v34 = vld [vmem:[%s1 + $0x20] sm:$0xff]
  %v35 = vld [vmem:[%s1 + $0x28] sm:$0xff]
  %v36 = vld [vmem:[%s1 + $0x30] sm:$0xff]
  %v37 = vld [vmem:[%s1 + $0x38] sm:$0xff]
  %v38 = vld [vmem:[%s1 + $0x40] sm:$0xff]
  %v39 = vld [vmem:[%s1 + $0x48] sm:$0xff]
  %v40 = vld [vmem:[%s1 + $0x50] sm:$0xff]
  %v41 = vld [vmem:[%s1 + $0x58] sm:$0xff]
  %v42 = vld [vmem:[%s1 + $0x60] sm:$0xff]
  %v43 = vld [vmem:[%s1 + $0x68] sm:$0xff]
  %v44 = vld [vmem:[%s1 + $0x70] sm:$0xff]
  %v45 = vld [vmem:[%s1 + $0x78] sm:$0xff]
  %v46 = vld [vmem:[%s3] sm:$0x1]
  %v48 = vlaneseq
  %v49 = vshrl.u32 %v48, 7
  %v50 = vsub.s32 0, %v49
  %v51 = vrot.slane %v46, %v50
  %53 = vmatprep.subr.mxu0 0.0
  %54 = vmatpush1.msra.mxu0 %v45
  %55 = vmatprep.subr.mxu0 0.0
  %56 = vmatpush1.msra.mxu0 %v44
  %57 = vmatprep.subr.mxu0 0.0
  %58 = vmatpush1.msra.mxu0 %v43
  %59 = vmatprep.subr.mxu0 0.0
  %60 = vmatpush1.msra.mxu0 %v42
  %61 = vmatprep.subr.mxu0 0.0
  %62 = vmatpush1.msra.mxu0 %v41
  %63 = vmatprep.subr.mxu0 0.0
  %64 = vmatpush1.msra.mxu0 %v40
  %65 = vmatprep.subr.mxu0 0.0
  %66 = vmatpush1.msra.mxu0 %v39
  %67 = vmatprep.subr.mxu0 0.0
  %68 = vmatpush1.msra.mxu0 %v38
  %69 = vmatprep.subr.mxu0 0.0
  %70 = vmatpush1.msra.mxu0 %v37
  %71 = vmatprep.subr.mxu0 0.0
  %72 = vmatpush1.msra.mxu0 %v36
  %73 = vmatprep.subr.mxu0 0.0
  %74 = vmatpush1.msra.mxu0 %v35
  %75 = vmatprep.subr.mxu0 0.0
  %76 = vmatpush1.msra.mxu0 %v34
  %77 = vmatprep.subr.mxu0 0.0
  %78 = vmatpush1.msra.mxu0 %v33
  %79 = vmatprep.subr.mxu0 0.0
  %80 = vmatpush1.msra.mxu0 %v32
  %81 = vmatprep.subr.mxu0 0.0
  %82 = vmatpush1.msra.mxu0 %v31
  %83 = vmatprep.subr.mxu0 0.0
  %84 = vmatpush1.msra.mxu0 %v30
  %85 = vmatprep.subr.mxu0 0.0
  %86 = vmatpush2.msra.mxu0 0.0
  %87 = vmatprep.subr.mxu0 0.0
  %88 = vmatpush2.msra.mxu0 0.0
  %89 = vmatprep.subr.mxu0 0.0
  %90 = vmatpush2.msra.mxu0 0.0
  %91 = vmatprep.subr.mxu0 0.0
  %92 = vmatpush2.msra.mxu0 0.0
  %93 = vmatprep.subr.mxu0 0.0
  %94 = vmatpush2.msra.mxu0 0.0
  %95 = vmatprep.subr.mxu0 0.0
  %96 = vmatpush2.msra.mxu0 0.0
  %97 = vmatprep.subr.mxu0 0.0
  %98 = vmatpush2.msra.mxu0 0.0
  %99 = vmatprep.subr.mxu0 0.0
  %100 = vmatpush2.msra.mxu0 0.0
  %101 = vmatprep.subr.mxu0 0.0
  %102 = vmatpush2.msra.mxu0 0.0
  %103 = vmatprep.subr.mxu0 0.0
  %104 = vmatpush2.msra.mxu0 0.0
  %105 = vmatprep.subr.mxu0 0.0
  %106 = vmatpush2.msra.mxu0 0.0
  %107 = vmatprep.subr.mxu0 0.0
  %108 = vmatpush2.msra.mxu0 0.0
  %109 = vmatprep.subr.mxu0 0.0
  %110 = vmatpush2.msra.mxu0 0.0
  %111 = vmatprep.subr.mxu0 0.0
  %112 = vmatpush2.msra.mxu0 0.0
  %113 = vmatprep.subr.mxu0 0.0
  %114 = vmatpush2.msra.mxu0 0.0
  %115 = vmatprep.subr.mxu0 0.0
  %116 = vmatpush2.msra.mxu0 0.0
  %117 = vmatprep.mubr.f32.mxu0 0.0
  %118 = vmatmul.mubr.f32.gmra.mxu0 %v22
  %v119 = vpop.f32.mrf.mxu0
  %v120 = vadd.f32 %v51, %v119
  %v121 = vpop.f32.mrf.mxu0
  %122 = vmatprep.mubr.f32.mxu0 0.0
  %123 = vmatmul.mubr.f32.gmra.mxu0 %v23
  %v124 = vpop.f32.mrf.mxu0
  %v125 = vadd.f32 %v51, %v124
  %v126 = vpop.f32.mrf.mxu0
  %127 = vmatprep.mubr.f32.mxu0 0.0
  %128 = vmatmul.mubr.f32.gmra.mxu0 %v24
  %v129 = vpop.f32.mrf.mxu0
  %v130 = vadd.f32 %v51, %v129
  %v131 = vpop.f32.mrf.mxu0
  %132 = vmatprep.mubr.f32.mxu0 0.0
  %133 = vmatmul.mubr.f32.gmra.mxu0 %v25
  %v134 = vpop.f32.mrf.mxu0
  %v135 = vadd.f32 %v51, %v134
  %v136 = vpop.f32.mrf.mxu0
  %137 = vmatprep.mubr.f32.mxu0 0.0
  %138 = vmatmul.mubr.f32.gmra.mxu0 %v26
  %v139 = vpop.f32.mrf.mxu0
  %v140 = vadd.f32 %v51, %v139
  %v141 = vpop.f32.mrf.mxu0
  %142 = vmatprep.mubr.f32.mxu0 0.0
  %143 = vmatmul.mubr.f32.gmra.mxu0 %v27
  %v144 = vpop.f32.mrf.mxu0
  %v145 = vadd.f32 %v51, %v144
  %v146 = vpop.f32.mrf.mxu0
  %147 = vmatprep.mubr.f32.mxu0 0.0
  %148 = vmatmul.mubr.f32.gmra.mxu0 %v28
  %v149 = vpop.f32.mrf.mxu0
  %v150 = vadd.f32 %v51, %v149
  %v151 = vpop.f32.mrf.mxu0
  %152 = vmatprep.mubr.f32.mxu0 0.0
  %153 = vmatmul.mubr.f32.gmra.mxu0 %v29
  %v154 = vpop.f32.mrf.mxu0
  %v155 = vadd.f32 %v51, %v154
  %v156 = vpop.f32.mrf.mxu0
  %157 = vdwg.mxu0
  %158 = vst [vmem:[#allocation3] sm:$0xff] %v120
  %159 = vst [vmem:[#allocation3 + $0x8] sm:$0xff] %v125
  %160 = vst [vmem:[#allocation3 + $0x10] sm:$0xff] %v130
  %161 = vst [vmem:[#allocation3 + $0x18] sm:$0xff] %v135
  %162 = vst [vmem:[#allocation3 + $0x20] sm:$0xff] %v140
  %163 = vst [vmem:[#allocation3 + $0x28] sm:$0xff] %v145
  %164 = vst [vmem:[#allocation3 + $0x30] sm:$0xff] %v150
  %165 = vst [vmem:[#allocation3 + $0x38] sm:$0xff] %v155
  %v166 = vld [vmem:[#allocation2] sm:$0xff]
  %v167 = vld [vmem:[#allocation3] sm:$0xff]
  %v168 = vld [vmem:[%s2] sm:$0xff]
  %v169 = vld [vmem:[%s2 + $0x8] sm:$0xff]
  %v170 = vld [vmem:[%s2 + $0x10] sm:$0xff]
  %v171 = vld [vmem:[%s2 + $0x18] sm:$0xff]
  %v172 = vld [vmem:[%s2 + $0x20] sm:$0xff]
  %v173 = vld [vmem:[%s2 + $0x28] sm:$0xff]
  %v174 = vld [vmem:[%s2 + $0x30] sm:$0xff]
  %v175 = vld [vmem:[%s2 + $0x38] sm:$0xff]
  %v176 = vld [vmem:[%s2 + $0x40] sm:$0xff]
  %v177 = vld [vmem:[%s2 + $0x48] sm:$0xff]
  %v178 = vld [vmem:[%s2 + $0x50] sm:$0xff]
  %v179 = vld [vmem:[%s2 + $0x58] sm:$0xff]
  %v180 = vld [vmem:[%s2 + $0x60] sm:$0xff]
  %v181 = vld [vmem:[%s2 + $0x68] sm:$0xff]
  %v182 = vld [vmem:[%s2 + $0x70] sm:$0xff]
  %v183 = vld [vmem:[%s2 + $0x78] sm:$0xff]
  %184 = vmatprep.subr.mxu0 0.0
  %185 = vmatpush1.msra.mxu0 %v183
  %186 = vmatprep.subr.mxu0 0.0
  %187 = vmatpush1.msra.mxu0 %v182
  %188 = vmatprep.subr.mxu0 0.0
  %189 = vmatpush1.msra.mxu0 %v181
  %190 = vmatprep.subr.mxu0 0.0
  %191 = vmatpush1.msra.mxu0 %v180
  %192 = vmatprep.subr.mxu0 0.0
  %193 = vmatpush1.msra.mxu0 %v179
  %194 = vmatprep.subr.mxu0 0.0
  %195 = vmatpush1.msra.mxu0 %v178
  %196 = vmatprep.subr.mxu0 0.0
  %197 = vmatpush1.msra.mxu0 %v177
  %198 = vmatprep.subr.mxu0 0.0
  %199 = vmatpush1.msra.mxu0 %v176
  %200 = vmatprep.subr.mxu0 0.0
  %201 = vmatpush1.msra.mxu0 %v175
  %202 = vmatprep.subr.mxu0 0.0
  %203 = vmatpush1.msra.mxu0 %v174
  %204 = vmatprep.subr.mxu0 0.0
  %205 = vmatpush1.msra.mxu0 %v173
  %206 = vmatprep.subr.mxu0 0.0
  %207 = vmatpush1.msra.mxu0 %v172
  %208 = vmatprep.subr.mxu0 0.0
  %209 = vmatpush1.msra.mxu0 %v171
  %210 = vmatprep.subr.mxu0 0.0
  %211 = vmatpush1.msra.mxu0 %v170
  %212 = vmatprep.subr.mxu0 0.0
  %213 = vmatpush1.msra.mxu0 %v169
  %214 = vmatprep.subr.mxu0 0.0
  %215 = vmatpush1.msra.mxu0 %v168
  %216 = vmatprep.subr.mxu0 0.0
  %217 = vmatpush2.msra.mxu0 0.0
  %218 = vmatprep.subr.mxu0 0.0
  %219 = vmatpush2.msra.mxu0 0.0
  %220 = vmatprep.subr.mxu0 0.0
  %221 = vmatpush2.msra.mxu0 0.0
  %222 = vmatprep.subr.mxu0 0.0
  %223 = vmatpush2.msra.mxu0 0.0
  %224 = vmatprep.subr.mxu0 0.0
  %225 = vmatpush2.msra.mxu0 0.0
  %226 = vmatprep.subr.mxu0 0.0
  %227 = vmatpush2.msra.mxu0 0.0
  %228 = vmatprep.subr.mxu0 0.0
  %229 = vmatpush2.msra.mxu0 0.0
  %230 = vmatprep.subr.mxu0 0.0
  %231 = vmatpush2.msra.mxu0 0.0
  %232 = vmatprep.subr.mxu0 0.0
  %233 = vmatpush2.msra.mxu0 0.0
  %234 = vmatprep.subr.mxu0 0.0
  %235 = vmatpush2.msra.mxu0 0.0
  %236 = vmatprep.subr.mxu0 0.0
  %237 = vmatpush2.msra.mxu0 0.0
  %238 = vmatprep.subr.mxu0 0.0
  %239 = vmatpush2.msra.mxu0 0.0
  %240 = vmatprep.subr.mxu0 0.0
  %241 = vmatpush2.msra.mxu0 0.0
  %242 = vmatprep.subr.mxu0 0.0
  %243 = vmatpush2.msra.mxu0 0.0
  %244 = vmatprep.subr.mxu0 0.0
  %245 = vmatpush2.msra.mxu0 0.0
  %246 = vmatprep.subr.mxu0 0.0
  %247 = vmatpush2.msra.mxu0 0.0
  %248 = vmatprep.mubr.f32.mxu0 0.0
  %249 = vmatmul.mubr.f32.gmra.mxu0 %v166
  %v250 = vpop.f32.mrf.mxu0
  %v251 = vadd.f32 0.0, %v250
  %v252 = vpop.f32.mrf.mxu0
  %253 = vdwg.mxu0
  %v254 = vadd.f32 %v167, %v251
  %v255 = vtanh.pop %v254
  %256 = vst [vmem:[#allocation2] sm:$0xff] %v255
  %257 = vst [vmem:[%s4] sm:$0xff] %v255
  %v258 = vld [vmem:[#allocation2] sm:$0xff]
  %s259 = scalar_lea.vmem [#allocation3], 8
  %v260 = vld [vmem:[%s259] sm:$0xff]
  %v261 = vld [vmem:[%s2] sm:$0xff]
  %v262 = vld [vmem:[%s2 + $0x8] sm:$0xff]
  %v263 = vld [vmem:[%s2 + $0x10] sm:$0xff]
  %v264 = vld [vmem:[%s2 + $0x18] sm:$0xff]
  %v265 = vld [vmem:[%s2 + $0x20] sm:$0xff]
  %v266 = vld [vmem:[%s2 + $0x28] sm:$0xff]
  %v267 = vld [vmem:[%s2 + $0x30] sm:$0xff]
  %v268 = vld [vmem:[%s2 + $0x38] sm:$0xff]
  %v269 = vld [vmem:[%s2 + $0x40] sm:$0xff]
  %v270 = vld [vmem:[%s2 + $0x48] sm:$0xff]
  %v271 = vld [vmem:[%s2 + $0x50] sm:$0xff]
  %v272 = vld [vmem:[%s2 + $0x58] sm:$0xff]
  %v273 = vld [vmem:[%s2 + $0x60] sm:$0xff]
  %v274 = vld [vmem:[%s2 + $0x68] sm:$0xff]
  %v275 = vld [vmem:[%s2 + $0x70] sm:$0xff]
  %v276 = vld [vmem:[%s2 + $0x78] sm:$0xff]
  %277 = vmatprep.subr.mxu0 0.0
  %278 = vmatpush1.msra.mxu0 %v276
  %279 = vmatprep.subr.mxu0 0.0
  %280 = vmatpush1.msra.mxu0 %v275
  %281 = vmatprep.subr.mxu0 0.0
  %282 = vmatpush1.msra.mxu0 %v274
  %283 = vmatprep.subr.mxu0 0.0
  %284 = vmatpush1.msra.mxu0 %v273
  %285 = vmatprep.subr.mxu0 0.0
  %286 = vmatpush1.msra.mxu0 %v272
  %287 = vmatprep.subr.mxu0 0.0
  %288 = vmatpush1.msra.mxu0 %v271
  %289 = vmatprep.subr.mxu0 0.0
  %290 = vmatpush1.msra.mxu0 %v270
  %291 = vmatprep.subr.mxu0 0.0
  %292 = vmatpush1.msra.mxu0 %v269
  %293 = vmatprep.subr.mxu0 0.0
  %294 = vmatpush1.msra.mxu0 %v268
  %295 = vmatprep.subr.mxu0 0.0
  %296 = vmatpush1.msra.mxu0 %v267
  %297 = vmatprep.subr.mxu0 0.0
  %298 = vmatpush1.msra.mxu0 %v266
  %299 = vmatprep.subr.mxu0 0.0
  %300 = vmatpush1.msra.mxu0 %v265
  %301 = vmatprep.subr.mxu0 0.0
  %302 = vmatpush1.msra.mxu0 %v264
  %303 = vmatprep.subr.mxu0 0.0
  %304 = vmatpush1.msra.mxu0 %v263
  %305 = vmatprep.subr.mxu0 0.0
  %306 = vmatpush1.msra.mxu0 %v262
  %307 = vmatprep.subr.mxu0 0.0
  %308 = vmatpush1.msra.mxu0 %v261
  %309 = vmatprep.subr.mxu0 0.0
  %310 = vmatpush2.msra.mxu0 0.0
  %311 = vmatprep.subr.mxu0 0.0
  %312 = vmatpush2.msra.mxu0 0.0
  %313 = vmatprep.subr.mxu0 0.0
  %314 = vmatpush2.msra.mxu0 0.0
  %315 = vmatprep.subr.mxu0 0.0
  %316 = vmatpush2.msra.mxu0 0.0
  %317 = vmatprep.subr.mxu0 0.0
  %318 = vmatpush2.msra.mxu0 0.0
  %319 = vmatprep.subr.mxu0 0.0
  %320 = vmatpush2.msra.mxu0 0.0
  %321 = vmatprep.subr.mxu0 0.0
  %322 = vmatpush2.msra.mxu0 0.0
  %323 = vmatprep.subr.mxu0 0.0
  %324 = vmatpush2.msra.mxu0 0.0
  %325 = vmatprep.subr.mxu0 0.0
  %326 = vmatpush2.msra.mxu0 0.0
  %327 = vmatprep.subr.mxu0 0.0
  %328 = vmatpush2.msra.mxu0 0.0
  %329 = vmatprep.subr.mxu0 0.0
  %330 = vmatpush2.msra.mxu0 0.0
  %331 = vmatprep.subr.mxu0 0.0
  %332 = vmatpush2.msra.mxu0 0.0
  %333 = vmatprep.subr.mxu0 0.0
  %334 = vmatpush2.msra.mxu0 0.0
  %335 = vmatprep.subr.mxu0 0.0
  %336 = vmatpush2.msra.mxu0 0.0
  %337 = vmatprep.subr.mxu0 0.0
  %338 = vmatpush2.msra.mxu0 0.0
  %339 = vmatprep.subr.mxu0 0.0
  %340 = vmatpush2.msra.mxu0 0.0
  %341 = vmatprep.mubr.f32.mxu0 0.0
  %342 = vmatmul.mubr.f32.gmra.mxu0 %v258
  %v343 = vpop.f32.mrf.mxu0
  %v344 = vadd.f32 0.0, %v343
  %v345 = vpop.f32.mrf.mxu0
  %346 = vdwg.mxu0
  %v347 = vadd.f32 %v260, %v344
  %v348 = vtanh.pop %v347
  %349 = vst [vmem:[#allocation2] sm:$0xff] %v348
  %s350 = scalar_lea.vmem %s4, 8
  %351 = vst [vmem:[%s350] sm:$0xff] %v348
  %v352 = vld [vmem:[#allocation2] sm:$0xff]
  %s353 = scalar_lea.vmem [#allocation3], 16
  %v354 = vld [vmem:[%s353] sm:$0xff]
  %v355 = vld [vmem:[%s2] sm:$0xff]
  %v356 = vld [vmem:[%s2 + $0x8] sm:$0xff]
  %v357 = vld [vmem:[%s2 + $0x10] sm:$0xff]
  %v358 = vld [vmem:[%s2 + $0x18] sm:$0xff]
  %v359 = vld [vmem:[%s2 + $0x20] sm:$0xff]
  %v360 = vld [vmem:[%s2 + $0x28] sm:$0xff]
  %v361 = vld [vmem:[%s2 + $0x30] sm:$0xff]
  %v362 = vld [vmem:[%s2 + $0x38] sm:$0xff]
  %v363 = vld [vmem:[%s2 + $0x40] sm:$0xff]
  %v364 = vld [vmem:[%s2 + $0x48] sm:$0xff]
  %v365 = vld [vmem:[%s2 + $0x50] sm:$0xff]
  %v366 = vld [vmem:[%s2 + $0x58] sm:$0xff]
  %v367 = vld [vmem:[%s2 + $0x60] sm:$0xff]
  %v368 = vld [vmem:[%s2 + $0x68] sm:$0xff]
  %v369 = vld [vmem:[%s2 + $0x70] sm:$0xff]
  %v370 = vld [vmem:[%s2 + $0x78] sm:$0xff]
  %371 = vmatprep.subr.mxu0 0.0
  %372 = vmatpush1.msra.mxu0 %v370
  %373 = vmatprep.subr.mxu0 0.0
  %374 = vmatpush1.msra.mxu0 %v369
  %375 = vmatprep.subr.mxu0 0.0
  %376 = vmatpush1.msra.mxu0 %v368
  %377 = vmatprep.subr.mxu0 0.0
  %378 = vmatpush1.msra.mxu0 %v367
  %379 = vmatprep.subr.mxu0 0.0
  %380 = vmatpush1.msra.mxu0 %v366
  %381 = vmatprep.subr.mxu0 0.0
  %382 = vmatpush1.msra.mxu0 %v365
  %383 = vmatprep.subr.mxu0 0.0
  %384 = vmatpush1.msra.mxu0 %v364
  %385 = vmatprep.subr.mxu0 0.0
  %386 = vmatpush1.msra.mxu0 %v363
  %387 = vmatprep.subr.mxu0 0.0
  %388 = vmatpush1.msra.mxu0 %v362
  %389 = vmatprep.subr.mxu0 0.0
  %390 = vmatpush1.msra.mxu0 %v361
  %391 = vmatprep.subr.mxu0 0.0
  %392 = vmatpush1.msra.mxu0 %v360
  %393 = vmatprep.subr.mxu0 0.0
  %394 = vmatpush1.msra.mxu0 %v359
  %395 = vmatprep.subr.mxu0 0.0
  %396 = vmatpush1.msra.mxu0 %v358
  %397 = vmatprep.subr.mxu0 0.0
  %398 = vmatpush1.msra.mxu0 %v357
  %399 = vmatprep.subr.mxu0 0.0
  %400 = vmatpush1.msra.mxu0 %v356
  %401 = vmatprep.subr.mxu0 0.0
  %402 = vmatpush1.msra.mxu0 %v355
  %403 = vmatprep.subr.mxu0 0.0
  %404 = vmatpush2.msra.mxu0 0.0
  %405 = vmatprep.subr.mxu0 0.0
  %406 = vmatpush2.msra.mxu0 0.0
  %407 = vmatprep.subr.mxu0 0.0
  %408 = vmatpush2.msra.mxu0 0.0
  %409 = vmatprep.subr.mxu0 0.0
  %410 = vmatpush2.msra.mxu0 0.0
  %411 = vmatprep.subr.mxu0 0.0
  %412 = vmatpush2.msra.mxu0 0.0
  %413 = vmatprep.subr.mxu0 0.0
  %414 = vmatpush2.msra.mxu0 0.0
  %415 = vmatprep.subr.mxu0 0.0
  %416 = vmatpush2.msra.mxu0 0.0
  %417 = vmatprep.subr.mxu0 0.0
  %418 = vmatpush2.msra.mxu0 0.0
  %419 = vmatprep.subr.mxu0 0.0
  %420 = vmatpush2.msra.mxu0 0.0
  %421 = vmatprep.subr.mxu0 0.0
  %422 = vmatpush2.msra.mxu0 0.0
  %423 = vmatprep.subr.mxu0 0.0
  %424 = vmatpush2.msra.mxu0 0.0
  %425 = vmatprep.subr.mxu0 0.0
  %426 = vmatpush2.msra.mxu0 0.0
  %427 = vmatprep.subr.mxu0 0.0
  %428 = vmatpush2.msra.mxu0 0.0
  %429 = vmatprep.subr.mxu0 0.0
  %430 = vmatpush2.msra.mxu0 0.0
  %431 = vmatprep.subr.mxu0 0.0
  %432 = vmatpush2.msra.mxu0 0.0
  %433 = vmatprep.subr.mxu0 0.0
  %434 = vmatpush2.msra.mxu0 0.0
  %435 = vmatprep.mubr.f32.mxu0 0.0
  %436 = vmatmul.mubr.f32.gmra.mxu0 %v352
  %v437 = vpop.f32.mrf.mxu0
  %v438 = vadd.f32 0.0, %v437
  %v439 = vpop.f32.mrf.mxu0
  %440 = vdwg.mxu0
  %v441 = vadd.f32 %v354, %v438
  %v442 = vtanh.pop %v441
  %443 = vst [vmem:[#allocation2] sm:$0xff] %v442
  %s444 = scalar_lea.vmem %s4, 16
  %445 = vst [vmem:[%s444] sm:$0xff] %v442
  %v446 = vld [vmem:[#allocation2] sm:$0xff]
  %s447 = scalar_lea.vmem [#allocation3], 24
  %v448 = vld [vmem:[%s447] sm:$0xff]
  %v449 = vld [vmem:[%s2] sm:$0xff]
  %v450 = vld [vmem:[%s2 + $0x8] sm:$0xff]
  %v451 = vld [vmem:[%s2 + $0x10] sm:$0xff]
  %v452 = vld [vmem:[%s2 + $0x18] sm:$0xff]
  %v453 = vld [vmem:[%s2 + $0x20] sm:$0xff]
  %v454 = vld [vmem:[%s2 + $0x28] sm:$0xff]
  %v455 = vld [vmem:[%s2 + $0x30] sm:$0xff]
  %v456 = vld [vmem:[%s2 + $0x38] sm:$0xff]
  %v457 = vld [vmem:[%s2 + $0x40] sm:$0xff]
  %v458 = vld [vmem:[%s2 + $0x48] sm:$0xff]
  %v459 = vld [vmem:[%s2 + $0x50] sm:$0xff]
  %v460 = vld [vmem:[%s2 + $0x58] sm:$0xff]
  %v461 = vld [vmem:[%s2 + $0x60] sm:$0xff]
  %v462 = vld [vmem:[%s2 + $0x68] sm:$0xff]
  %v463 = vld [vmem:[%s2 + $0x70] sm:$0xff]
  %v464 = vld [vmem:[%s2 + $0x78] sm:$0xff]
  %465 = vmatprep.subr.mxu0 0.0
  %466 = vmatpush1.msra.mxu0 %v464
  %467 = vmatprep.subr.mxu0 0.0
  %468 = vmatpush1.msra.mxu0 %v463
  %469 = vmatprep.subr.mxu0 0.0
  %470 = vmatpush1.msra.mxu0 %v462
  %471 = vmatprep.subr.mxu0 0.0
  %472 = vmatpush1.msra.mxu0 %v461
  %473 = vmatprep.subr.mxu0 0.0
  %474 = vmatpush1.msra.mxu0 %v460
  %475 = vmatprep.subr.mxu0 0.0
  %476 = vmatpush1.msra.mxu0 %v459
  %477 = vmatprep.subr.mxu0 0.0
  %478 = vmatpush1.msra.mxu0 %v458
  %479 = vmatprep.subr.mxu0 0.0
  %480 = vmatpush1.msra.mxu0 %v457
  %481 = vmatprep.subr.mxu0 0.0
  %482 = vmatpush1.msra.mxu0 %v456
  %483 = vmatprep.subr.mxu0 0.0
  %484 = vmatpush1.msra.mxu0 %v455
  %485 = vmatprep.subr.mxu0 0.0
  %486 = vmatpush1.msra.mxu0 %v454
  %487 = vmatprep.subr.mxu0 0.0
  %488 = vmatpush1.msra.mxu0 %v453
  %489 = vmatprep.subr.mxu0 0.0
  %490 = vmatpush1.msra.mxu0 %v452
  %491 = vmatprep.subr.mxu0 0.0
  %492 = vmatpush1.msra.mxu0 %v451
  %493 = vmatprep.subr.mxu0 0.0
  %494 = vmatpush1.msra.mxu0 %v450
  %495 = vmatprep.subr.mxu0 0.0
  %496 = vmatpush1.msra.mxu0 %v449
  %497 = vmatprep.subr.mxu0 0.0
  %498 = vmatpush2.msra.mxu0 0.0
  %499 = vmatprep.subr.mxu0 0.0
  %500 = vmatpush2.msra.mxu0 0.0
  %501 = vmatprep.subr.mxu0 0.0
  %502 = vmatpush2.msra.mxu0 0.0
  %503 = vmatprep.subr.mxu0 0.0
  %504 = vmatpush2.msra.mxu0 0.0
  %505 = vmatprep.subr.mxu0 0.0
  %506 = vmatpush2.msra.mxu0 0.0
  %507 = vmatprep.subr.mxu0 0.0
  %508 = vmatpush2.msra.mxu0 0.0
  %509 = vmatprep.subr.mxu0 0.0
  %510 = vmatpush2.msra.mxu0 0.0
  %511 = vmatprep.subr.mxu0 0.0
  %512 = vmatpush2.msra.mxu0 0.0
  %513 = vmatprep.subr.mxu0 0.0
  %514 = vmatpush2.msra.mxu0 0.0
  %515 = vmatprep.subr.mxu0 0.0
  %516 = vmatpush2.msra.mxu0 0.0
  %517 = vmatprep.subr.mxu0 0.0
  %518 = vmatpush2.msra.mxu0 0.0
  %519 = vmatprep.subr.mxu0 0.0
  %520 = vmatpush2.msra.mxu0 0.0
  %521 = vmatprep.subr.mxu0 0.0
  %522 = vmatpush2.msra.mxu0 0.0
  %523 = vmatprep.subr.mxu0 0.0
  %524 = vmatpush2.msra.mxu0 0.0
  %525 = vmatprep.subr.mxu0 0.0
  %526 = vmatpush2.msra.mxu0 0.0
  %527 = vmatprep.subr.mxu0 0.0
  %528 = vmatpush2.msra.mxu0 0.0
  %529 = vmatprep.mubr.f32.mxu0 0.0
  %530 = vmatmul.mubr.f32.gmra.mxu0 %v446
  %v531 = vpop.f32.mrf.mxu0
  %v532 = vadd.f32 0.0, %v531
  %v533 = vpop.f32.mrf.mxu0
  %534 = vdwg.mxu0
  %v535 = vadd.f32 %v448, %v532
  %v536 = vtanh.pop %v535
  %537 = vst [vmem:[#allocation2] sm:$0xff] %v536
  %s538 = scalar_lea.vmem %s4, 24
  %539 = vst [vmem:[%s538] sm:$0xff] %v536
  %v540 = vld [vmem:[#allocation2] sm:$0xff]
  %s541 = scalar_lea.vmem [#allocation3], 32
  %v542 = vld [vmem:[%s541] sm:$0xff]
  %v543 = vld [vmem:[%s2] sm:$0xff]
  %v544 = vld [vmem:[%s2 + $0x8] sm:$0xff]
  %v545 = vld [vmem:[%s2 + $0x10] sm:$0xff]
  %v546 = vld [vmem:[%s2 + $0x18] sm:$0xff]
  %v547 = vld [vmem:[%s2 + $0x20] sm:$0xff]
  %v548 = vld [vmem:[%s2 + $0x28] sm:$0xff]
  %v549 = vld [vmem:[%s2 + $0x30] sm:$0xff]
  %v550 = vld [vmem:[%s2 + $0x38] sm:$0xff]
  %v551 = vld [vmem:[%s2 + $0x40] sm:$0xff]
  %v552 = vld [vmem:[%s2 + $0x48] sm:$0xff]
  %v553 = vld [vmem:[%s2 + $0x50] sm:$0xff]
  %v554 = vld [vmem:[%s2 + $0x58] sm:$0xff]
  %v555 = vld [vmem:[%s2 + $0x60] sm:$0xff]
  %v556 = vld [vmem:[%s2 + $0x68] sm:$0xff]
  %v557 = vld [vmem:[%s2 + $0x70] sm:$0xff]
  %v558 = vld [vmem:[%s2 + $0x78] sm:$0xff]
  %559 = vmatprep.subr.mxu0 0.0
  %560 = vmatpush1.msra.mxu0 %v558
  %561 = vmatprep.subr.mxu0 0.0
  %562 = vmatpush1.msra.mxu0 %v557
  %563 = vmatprep.subr.mxu0 0.0
  %564 = vmatpush1.msra.mxu0 %v556
  %565 = vmatprep.subr.mxu0 0.0
  %566 = vmatpush1.msra.mxu0 %v555
  %567 = vmatprep.subr.mxu0 0.0
  %568 = vmatpush1.msra.mxu0 %v554
  %569 = vmatprep.subr.mxu0 0.0
  %570 = vmatpush1.msra.mxu0 %v553
  %571 = vmatprep.subr.mxu0 0.0
  %572 = vmatpush1.msra.mxu0 %v552
  %573 = vmatprep.subr.mxu0 0.0
  %574 = vmatpush1.msra.mxu0 %v551
  %575 = vmatprep.subr.mxu0 0.0
  %576 = vmatpush1.msra.mxu0 %v550
  %577 = vmatprep.subr.mxu0 0.0
  %578 = vmatpush1.msra.mxu0 %v549
  %579 = vmatprep.subr.mxu0 0.0
  %580 = vmatpush1.msra.mxu0 %v548
  %581 = vmatprep.subr.mxu0 0.0
  %582 = vmatpush1.msra.mxu0 %v547
  %583 = vmatprep.subr.mxu0 0.0
  %584 = vmatpush1.msra.mxu0 %v546
  %585 = vmatprep.subr.mxu0 0.0
  %586 = vmatpush1.msra.mxu0 %v545
  %587 = vmatprep.subr.mxu0 0.0
  %588 = vmatpush1.msra.mxu0 %v544
  %589 = vmatprep.subr.mxu0 0.0
  %590 = vmatpush1.msra.mxu0 %v543
  %591 = vmatprep.subr.mxu0 0.0
  %592 = vmatpush2.msra.mxu0 0.0
  %593 = vmatprep.subr.mxu0 0.0
  %594 = vmatpush2.msra.mxu0 0.0
  %595 = vmatprep.subr.mxu0 0.0
  %596 = vmatpush2.msra.mxu0 0.0
  %597 = vmatprep.subr.mxu0 0.0
  %598 = vmatpush2.msra.mxu0 0.0
  %599 = vmatprep.subr.mxu0 0.0
  %600 = vmatpush2.msra.mxu0 0.0
  %601 = vmatprep.subr.mxu0 0.0
  %602 = vmatpush2.msra.mxu0 0.0
  %603 = vmatprep.subr.mxu0 0.0
  %604 = vmatpush2.msra.mxu0 0.0
  %605 = vmatprep.subr.mxu0 0.0
  %606 = vmatpush2.msra.mxu0 0.0
  %607 = vmatprep.subr.mxu0 0.0
  %608 = vmatpush2.msra.mxu0 0.0
  %609 = vmatprep.subr.mxu0 0.0
  %610 = vmatpush2.msra.mxu0 0.0
  %611 = vmatprep.subr.mxu0 0.0
  %612 = vmatpush2.msra.mxu0 0.0
  %613 = vmatprep.subr.mxu0 0.0
  %614 = vmatpush2.msra.mxu0 0.0
  %615 = vmatprep.subr.mxu0 0.0
  %616 = vmatpush2.msra.mxu0 0.0
  %617 = vmatprep.subr.mxu0 0.0
  %618 = vmatpush2.msra.mxu0 0.0
  %619 = vmatprep.subr.mxu0 0.0
  %620 = vmatpush2.msra.mxu0 0.0
  %621 = vmatprep.subr.mxu0 0.0
  %622 = vmatpush2.msra.mxu0 0.0
  %623 = vmatprep.mubr.f32.mxu0 0.0
  %624 = vmatmul.mubr.f32.gmra.mxu0 %v540
  %v625 = vpop.f32.mrf.mxu0
  %v626 = vadd.f32 0.0, %v625
  %v627 = vpop.f32.mrf.mxu0
  %628 = vdwg.mxu0
  %v629 = vadd.f32 %v542, %v626
  %v630 = vtanh.pop %v629
  %631 = vst [vmem:[#allocation2] sm:$0xff] %v630
  %s632 = scalar_lea.vmem %s4, 32
  %633 = vst [vmem:[%s632] sm:$0xff] %v630
  %v634 = vld [vmem:[#allocation2] sm:$0xff]
  %s635 = scalar_lea.vmem [#allocation3], 40
  %v636 = vld [vmem:[%s635] sm:$0xff]
  %v637 = vld [vmem:[%s2] sm:$0xff]
  %v638 = vld [vmem:[%s2 + $0x8] sm:$0xff]
  %v639 = vld [vmem:[%s2 + $0x10] sm:$0xff]
  %v640 = vld [vmem:[%s2 + $0x18] sm:$0xff]
  %v641 = vld [vmem:[%s2 + $0x20] sm:$0xff]
  %v642 = vld [vmem:[%s2 + $0x28] sm:$0xff]
  %v643 = vld [vmem:[%s2 + $0x30] sm:$0xff]
  %v644 = vld [vmem:[%s2 + $0x38] sm:$0xff]
  %v645 = vld [vmem:[%s2 + $0x40] sm:$0xff]
  %v646 = vld [vmem:[%s2 + $0x48] sm:$0xff]
  %v647 = vld [vmem:[%s2 + $0x50] sm:$0xff]
  %v648 = vld [vmem:[%s2 + $0x58] sm:$0xff]
  %v649 = vld [vmem:[%s2 + $0x60] sm:$0xff]
  %v650 = vld [vmem:[%s2 + $0x68] sm:$0xff]
  %v651 = vld [vmem:[%s2 + $0x70] sm:$0xff]
  %v652 = vld [vmem:[%s2 + $0x78] sm:$0xff]
  %653 = vmatprep.subr.mxu0 0.0
  %654 = vmatpush1.msra.mxu0 %v652
  %655 = vmatprep.subr.mxu0 0.0
  %656 = vmatpush1.msra.mxu0 %v651
  %657 = vmatprep.subr.mxu0 0.0
  %658 = vmatpush1.msra.mxu0 %v650
  %659 = vmatprep.subr.mxu0 0.0
  %660 = vmatpush1.msra.mxu0 %v649
  %661 = vmatprep.subr.mxu0 0.0
  %662 = vmatpush1.msra.mxu0 %v648
  %663 = vmatprep.subr.mxu0 0.0
  %664 = vmatpush1.msra.mxu0 %v647
  %665 = vmatprep.subr.mxu0 0.0
  %666 = vmatpush1.msra.mxu0 %v646
  %667 = vmatprep.subr.mxu0 0.0
  %668 = vmatpush1.msra.mxu0 %v645
  %669 = vmatprep.subr.mxu0 0.0
  %670 = vmatpush1.msra.mxu0 %v644
  %671 = vmatprep.subr.mxu0 0.0
  %672 = vmatpush1.msra.mxu0 %v643
  %673 = vmatprep.subr.mxu0 0.0
  %674 = vmatpush1.msra.mxu0 %v642
  %675 = vmatprep.subr.mxu0 0.0
  %676 = vmatpush1.msra.mxu0 %v641
  %677 = vmatprep.subr.mxu0 0.0
  %678 = vmatpush1.msra.mxu0 %v640
  %679 = vmatprep.subr.mxu0 0.0
  %680 = vmatpush1.msra.mxu0 %v639
  %681 = vmatprep.subr.mxu0 0.0
  %682 = vmatpush1.msra.mxu0 %v638
  %683 = vmatprep.subr.mxu0 0.0
  %684 = vmatpush1.msra.mxu0 %v637
  %685 = vmatprep.subr.mxu0 0.0
  %686 = vmatpush2.msra.mxu0 0.0
  %687 = vmatprep.subr.mxu0 0.0
  %688 = vmatpush2.msra.mxu0 0.0
  %689 = vmatprep.subr.mxu0 0.0
  %690 = vmatpush2.msra.mxu0 0.0
  %691 = vmatprep.subr.mxu0 0.0
  %692 = vmatpush2.msra.mxu0 0.0
  %693 = vmatprep.subr.mxu0 0.0
  %694 = vmatpush2.msra.mxu0 0.0
  %695 = vmatprep.subr.mxu0 0.0
  %696 = vmatpush2.msra.mxu0 0.0
  %697 = vmatprep.subr.mxu0 0.0
  %698 = vmatpush2.msra.mxu0 0.0
  %699 = vmatprep.subr.mxu0 0.0
  %700 = vmatpush2.msra.mxu0 0.0
  %701 = vmatprep.subr.mxu0 0.0
  %702 = vmatpush2.msra.mxu0 0.0
  %703 = vmatprep.subr.mxu0 0.0
  %704 = vmatpush2.msra.mxu0 0.0
  %705 = vmatprep.subr.mxu0 0.0
  %706 = vmatpush2.msra.mxu0 0.0
  %707 = vmatprep.subr.mxu0 0.0
  %708 = vmatpush2.msra.mxu0 0.0
  %709 = vmatprep.subr.mxu0 0.0
  %710 = vmatpush2.msra.mxu0 0.0
  %711 = vmatprep.subr.mxu0 0.0
  %712 = vmatpush2.msra.mxu0 0.0
  %713 = vmatprep.subr.mxu0 0.0
  %714 = vmatpush2.msra.mxu0 0.0
  %715 = vmatprep.subr.mxu0 0.0
  %716 = vmatpush2.msra.mxu0 0.0
  %717 = vmatprep.mubr.f32.mxu0 0.0
  %718 = vmatmul.mubr.f32.gmra.mxu0 %v634
  %v719 = vpop.f32.mrf.mxu0
  %v720 = vadd.f32 0.0, %v719
  %v721 = vpop.f32.mrf.mxu0
  %722 = vdwg.mxu0
  %v723 = vadd.f32 %v636, %v720
  %v724 = vtanh.pop %v723
  %725 = vst [vmem:[#allocation2] sm:$0xff] %v724
  %s726 = scalar_lea.vmem %s4, 40
  %727 = vst [vmem:[%s726] sm:$0xff] %v724
  %v728 = vld [vmem:[#allocation2] sm:$0xff]
  %s729 = scalar_lea.vmem [#allocation3], 48
  %v730 = vld [vmem:[%s729] sm:$0xff]
  %v731 = vld [vmem:[%s2] sm:$0xff]
  %v732 = vld [vmem:[%s2 + $0x8] sm:$0xff]
  %v733 = vld [vmem:[%s2 + $0x10] sm:$0xff]
  %v734 = vld [vmem:[%s2 + $0x18] sm:$0xff]
  %v735 = vld [vmem:[%s2 + $0x20] sm:$0xff]
  %v736 = vld [vmem:[%s2 + $0x28] sm:$0xff]
  %v737 = vld [vmem:[%s2 + $0x30] sm:$0xff]
  %v738 = vld [vmem:[%s2 + $0x38] sm:$0xff]
  %v739 = vld [vmem:[%s2 + $0x40] sm:$0xff]
  %v740 = vld [vmem:[%s2 + $0x48] sm:$0xff]
  %v741 = vld [vmem:[%s2 + $0x50] sm:$0xff]
  %v742 = vld [vmem:[%s2 + $0x58] sm:$0xff]
  %v743 = vld [vmem:[%s2 + $0x60] sm:$0xff]
  %v744 = vld [vmem:[%s2 + $0x68] sm:$0xff]
  %v745 = vld [vmem:[%s2 + $0x70] sm:$0xff]
  %v746 = vld [vmem:[%s2 + $0x78] sm:$0xff]
  %747 = vmatprep.subr.mxu0 0.0
  %748 = vmatpush1.msra.mxu0 %v746
  %749 = vmatprep.subr.mxu0 0.0
  %750 = vmatpush1.msra.mxu0 %v745
  %751 = vmatprep.subr.mxu0 0.0
  %752 = vmatpush1.msra.mxu0 %v744
  %753 = vmatprep.subr.mxu0 0.0
  %754 = vmatpush1.msra.mxu0 %v743
  %755 = vmatprep.subr.mxu0 0.0
  %756 = vmatpush1.msra.mxu0 %v742
  %757 = vmatprep.subr.mxu0 0.0
  %758 = vmatpush1.msra.mxu0 %v741
  %759 = vmatprep.subr.mxu0 0.0
  %760 = vmatpush1.msra.mxu0 %v740
  %761 = vmatprep.subr.mxu0 0.0
  %762 = vmatpush1.msra.mxu0 %v739
  %763 = vmatprep.subr.mxu0 0.0
  %764 = vmatpush1.msra.mxu0 %v738
  %765 = vmatprep.subr.mxu0 0.0
  %766 = vmatpush1.msra.mxu0 %v737
  %767 = vmatprep.subr.mxu0 0.0
  %768 = vmatpush1.msra.mxu0 %v736
  %769 = vmatprep.subr.mxu0 0.0
  %770 = vmatpush1.msra.mxu0 %v735
  %771 = vmatprep.subr.mxu0 0.0
  %772 = vmatpush1.msra.mxu0 %v734
  %773 = vmatprep.subr.mxu0 0.0
  %774 = vmatpush1.msra.mxu0 %v733
  %775 = vmatprep.subr.mxu0 0.0
  %776 = vmatpush1.msra.mxu0 %v732
  %777 = vmatprep.subr.mxu0 0.0
  %778 = vmatpush1.msra.mxu0 %v731
  %779 = vmatprep.subr.mxu0 0.0
  %780 = vmatpush2.msra.mxu0 0.0
  %781 = vmatprep.subr.mxu0 0.0
  %782 = vmatpush2.msra.mxu0 0.0
  %783 = vmatprep.subr.mxu0 0.0
  %784 = vmatpush2.msra.mxu0 0.0
  %785 = vmatprep.subr.mxu0 0.0
  %786 = vmatpush2.msra.mxu0 0.0
  %787 = vmatprep.subr.mxu0 0.0
  %788 = vmatpush2.msra.mxu0 0.0
  %789 = vmatprep.subr.mxu0 0.0
  %790 = vmatpush2.msra.mxu0 0.0
  %791 = vmatprep.subr.mxu0 0.0
  %792 = vmatpush2.msra.mxu0 0.0
  %793 = vmatprep.subr.mxu0 0.0
  %794 = vmatpush2.msra.mxu0 0.0
  %795 = vmatprep.subr.mxu0 0.0
  %796 = vmatpush2.msra.mxu0 0.0
  %797 = vmatprep.subr.mxu0 0.0
  %798 = vmatpush2.msra.mxu0 0.0
  %799 = vmatprep.subr.mxu0 0.0
  %800 = vmatpush2.msra.mxu0 0.0
  %801 = vmatprep.subr.mxu0 0.0
  %802 = vmatpush2.msra.mxu0 0.0
  %803 = vmatprep.subr.mxu0 0.0
  %804 = vmatpush2.msra.mxu0 0.0
  %805 = vmatprep.subr.mxu0 0.0
  %806 = vmatpush2.msra.mxu0 0.0
  %807 = vmatprep.subr.mxu0 0.0
  %808 = vmatpush2.msra.mxu0 0.0
  %809 = vmatprep.subr.mxu0 0.0
  %810 = vmatpush2.msra.mxu0 0.0
  %811 = vmatprep.mubr.f32.mxu0 0.0
  %812 = vmatmul.mubr.f32.gmra.mxu0 %v728
  %v813 = vpop.f32.mrf.mxu0
  %v814 = vadd.f32 0.0, %v813
  %v815 = vpop.f32.mrf.mxu0
  %816 = vdwg.mxu0
  %v817 = vadd.f32 %v730, %v814
  %v818 = vtanh.pop %v817
  %819 = vst [vmem:[#allocation2] sm:$0xff] %v818
  %s820 = scalar_lea.vmem %s4, 48
  %821 = vst [vmem:[%s820] sm:$0xff] %v818
  %v822 = vld [vmem:[#allocation2] sm:$0xff]
  %s823 = scalar_lea.vmem [#allocation3], 56
  %v824 = vld [vmem:[%s823] sm:$0xff]
  %v825 = vld [vmem:[%s2] sm:$0xff]
  %v826 = vld [vmem:[%s2 + $0x8] sm:$0xff]
  %v827 = vld [vmem:[%s2 + $0x10] sm:$0xff]
  %v828 = vld [vmem:[%s2 + $0x18] sm:$0xff]
  %v829 = vld [vmem:[%s2 + $0x20] sm:$0xff]
  %v830 = vld [vmem:[%s2 + $0x28] sm:$0xff]
  %v831 = vld [vmem:[%s2 + $0x30] sm:$0xff]
  %v832 = vld [vmem:[%s2 + $0x38] sm:$0xff]
  %v833 = vld [vmem:[%s2 + $0x40] sm:$0xff]
  %v834 = vld [vmem:[%s2 + $0x48] sm:$0xff]
  %v835 = vld [vmem:[%s2 + $0x50] sm:$0xff]
  %v836 = vld [vmem:[%s2 + $0x58] sm:$0xff]
  %v837 = vld [vmem:[%s2 + $0x60] sm:$0xff]
  %v838 = vld [vmem:[%s2 + $0x68] sm:$0xff]
  %v839 = vld [vmem:[%s2 + $0x70] sm:$0xff]
  %v840 = vld [vmem:[%s2 + $0x78] sm:$0xff]
  %841 = vmatprep.subr.mxu0 0.0
  %842 = vmatpush1.msra.mxu0 %v840
  %843 = vmatprep.subr.mxu0 0.0
  %844 = vmatpush1.msra.mxu0 %v839
  %845 = vmatprep.subr.mxu0 0.0
  %846 = vmatpush1.msra.mxu0 %v838
  %847 = vmatprep.subr.mxu0 0.0
  %848 = vmatpush1.msra.mxu0 %v837
  %849 = vmatprep.subr.mxu0 0.0
  %850 = vmatpush1.msra.mxu0 %v836
  %851 = vmatprep.subr.mxu0 0.0
  %852 = vmatpush1.msra.mxu0 %v835
  %853 = vmatprep.subr.mxu0 0.0
  %854 = vmatpush1.msra.mxu0 %v834
  %855 = vmatprep.subr.mxu0 0.0
  %856 = vmatpush1.msra.mxu0 %v833
  %857 = vmatprep.subr.mxu0 0.0
  %858 = vmatpush1.msra.mxu0 %v832
  %859 = vmatprep.subr.mxu0 0.0
  %860 = vmatpush1.msra.mxu0 %v831
  %861 = vmatprep.subr.mxu0 0.0
  %862 = vmatpush1.msra.mxu0 %v830
  %863 = vmatprep.subr.mxu0 0.0
  %864 = vmatpush1.msra.mxu0 %v829
  %865 = vmatprep.subr.mxu0 0.0
  %866 = vmatpush1.msra.mxu0 %v828
  %867 = vmatprep.subr.mxu0 0.0
  %868 = vmatpush1.msra.mxu0 %v827
  %869 = vmatprep.subr.mxu0 0.0
  %870 = vmatpush1.msra.mxu0 %v826
  %871 = vmatprep.subr.mxu0 0.0
  %872 = vmatpush1.msra.mxu0 %v825
  %873 = vmatprep.subr.mxu0 0.0
  %874 = vmatpush2.msra.mxu0 0.0
  %875 = vmatprep.subr.mxu0 0.0
  %876 = vmatpush2.msra.mxu0 0.0
  %877 = vmatprep.subr.mxu0 0.0
  %878 = vmatpush2.msra.mxu0 0.0
  %879 = vmatprep.subr.mxu0 0.0
  %880 = vmatpush2.msra.mxu0 0.0
  %881 = vmatprep.subr.mxu0 0.0
  %882 = vmatpush2.msra.mxu0 0.0
  %883 = vmatprep.subr.mxu0 0.0
  %884 = vmatpush2.msra.mxu0 0.0
  %885 = vmatprep.subr.mxu0 0.0
  %886 = vmatpush2.msra.mxu0 0.0
  %887 = vmatprep.subr.mxu0 0.0
  %888 = vmatpush2.msra.mxu0 0.0
  %889 = vmatprep.subr.mxu0 0.0
  %890 = vmatpush2.msra.mxu0 0.0
  %891 = vmatprep.subr.mxu0 0.0
  %892 = vmatpush2.msra.mxu0 0.0
  %893 = vmatprep.subr.mxu0 0.0
  %894 = vmatpush2.msra.mxu0 0.0
  %895 = vmatprep.subr.mxu0 0.0
  %896 = vmatpush2.msra.mxu0 0.0
  %897 = vmatprep.subr.mxu0 0.0
  %898 = vmatpush2.msra.mxu0 0.0
  %899 = vmatprep.subr.mxu0 0.0
  %900 = vmatpush2.msra.mxu0 0.0
  %901 = vmatprep.subr.mxu0 0.0
  %902 = vmatpush2.msra.mxu0 0.0
  %903 = vmatprep.subr.mxu0 0.0
  %904 = vmatpush2.msra.mxu0 0.0
  %905 = vmatprep.mubr.f32.mxu0 0.0
  %906 = vmatmul.mubr.f32.gmra.mxu0 %v822
  %v907 = vpop.f32.mrf.mxu0
  %v908 = vadd.f32 0.0, %v907
  %v909 = vpop.f32.mrf.mxu0
  %910 = vdwg.mxu0
  %v911 = vadd.f32 %v824, %v908
  %v912 = vtanh.pop %v911
  %913 = vst [vmem:[#allocation2] sm:$0xff] %v912
  %s914 = scalar_lea.vmem %s4, 56
  %915 = vst [vmem:[%s914] sm:$0xff] %v912
  // Predicated region
  $region22: #{rnnlm_forward.3} parent=0 // pred_check
    _
  $region23: #{rnnlm_forward.3} parent=0 // pred_check_branch
    %917 = sbr.rel (0) target = $region25
  $region24: #{rnnlm_forward.3} parent=0 // pred_region
    _
  $region25: #{rnnlm_forward.3} parent=0 // pred_fallthru
    _
  // Predicated region
  $region26: #{rnnlm_forward.3} parent=0 // pred_check
    _
  $region27: #{rnnlm_forward.3} parent=0 // pred_check_branch
    %919 = sbr.rel (0) target = $region29
  $region28: #{rnnlm_forward.3} parent=0 // pred_region
    _
  $region29: #{rnnlm_forward.3} parent=0 // pred_fallthru
    _

</llo_original>
